<compile_context>
chip_gen: v7x
topology: tpu7x:2x2x1
jax: 0.10.0
libtpu: 0.0.40
codegen_flags: <defaults>
</compile_context>

<pallas_src>
import functools

import jax
import jax.numpy as jnp
from jax.experimental import pallas as pl
from jax.experimental.pallas import tpu as pltpu


EPS = 1e-5

# Logical (PyTorch) feature sizes and their lane-padded kernel sizes.
D_IN, D_H1, D_H2, D_H3, D_OUT = 12, 1000, 500, 100, 18
P_IN, P_H1, P_H2, P_H3, P_OUT = 128, 1024, 512, 128, 128


def _mlp_kernel(x_ref, w1_ref, b1_ref, w2_ref, b2_ref, w3_ref, b3_ref,
                g_ref, beta_ref, w4_ref, b4_ref, out_ref):
    # x: (B, 128) f32 -> bf16 operand for the MXU (weights are bf16, acc f32).
    x = x_ref[...].astype(jnp.bfloat16)

    # fc01: Linear(12, 1000)   (padded 128 -> 1024)
    h1 = jnp.dot(x, w1_ref[...], preferred_element_type=jnp.float32) + b1_ref[...]

    # fc02[0:2]: Linear(1000, 500) + ReLU   (1024 -> 512)
    h2 = jnp.dot(h1.astype(jnp.bfloat16), w2_ref[...],
                 preferred_element_type=jnp.float32) + b2_ref[...]
    h2 = jnp.maximum(h2, 0.0)

    # fc02[2:4]: Linear(500, 100) + ReLU    (512 -> 128)
    h3 = jnp.dot(h2.astype(jnp.bfloat16), w3_ref[...],
                 preferred_element_type=jnp.float32) + b3_ref[...]
    h3 = jnp.maximum(h3, 0.0)

    # fc02[4]: BatchNorm1d(100) — training-mode batch stats (biased var), f32.
    # Padded lanes (100..127) are identically zero and gamma/beta pads are 0,
    # so they stay zero through the normalization.
    mean = jnp.mean(h3, axis=0, keepdims=True)                    # (1, 128)
    cen = h3 - mean
    var = jnp.mean(cen * cen, axis=0, keepdims=True)
    h3n = cen * jax.lax.rsqrt(var + EPS) * g_ref[...] + beta_ref[...]

    # fc02[5]: Linear(100, 18)   (128 -> 128, first 18 lanes valid)
    out_ref[...] = jnp.dot(h3n.astype(jnp.bfloat16), w4_ref[...],
                           preferred_element_type=jnp.float32) + b4_ref[...]


@jax.jit
def my_network_noimage_forward(x_coordinate, pp):
    """x_coordinate: (B, 4, 3) float32, pp: padded params -> (B, 6, 3) float32."""
    B = x_coordinate.shape[0]
    x2d = x_coordinate.reshape(B, -1)                              # (B, 12)
    x2d = jnp.pad(x2d, ((0, 0), (0, P_IN - x2d.shape[1])))         # (B, 128)

    args = (
        x2d,
        pp["w1"], pp["b1"],
        pp["w2"], pp["b2"],
        pp["w3"], pp["b3"],
        pp["bn_gamma"], pp["bn_beta"],
        pp["w4"], pp["b4"],
    )

    vmem = pl.BlockSpec(memory_space=pltpu.MemorySpace.VMEM)
    out_pad = pl.pallas_call(
        _mlp_kernel,
        out_shape=jax.ShapeDtypeStruct((B, P_OUT), jnp.float32),
        in_specs=[vmem for _ in args],          # grid-less: whole arrays in VMEM,
        out_specs=vmem,                         # no pipeline double-buffering
    )(*args)

    return out_pad[:, :D_OUT].reshape(-1, 6, 3)


def init_params(key):
    """Deterministic PyTorch-style (uniform +-1/sqrt(fan_in)) initialization.

    Weights are stored as (in_features, out_features) — transposed relative to
    torch.nn.Linear.weight — so the kernel computes act @ W + b.
    """
    def linear(key, fan_in, fan_out):
        kw, kb = jax.random.split(key)
        bound = 1.0 / jnp.sqrt(float(fan_in))
        w = jax.random.uniform(kw, (fan_in, fan_out), jnp.float32, -bound, bound)
        b = jax.random.uniform(kb, (1, fan_out), jnp.float32, -bound, bound)
        return w, b

    k1, k2, k3, k4 = jax.random.split(key, 4)
    w1, b1 = linear(k1, D_IN, D_H1)     # fc01
    w2, b2 = linear(k2, D_H1, D_H2)     # fc02[0]
    w3, b3 = linear(k3, D_H2, D_H3)     # fc02[2]
    w4, b4 = linear(k4, D_H3, D_OUT)    # fc02[5]

    return {
        "w1": w1, "b1": b1,
        "w2": w2, "b2": b2,
        "w3": w3, "b3": b3,
        "bn_gamma": jnp.ones((1, D_H3), jnp.float32),   # BatchNorm1d default init
        "bn_beta": jnp.zeros((1, D_H3), jnp.float32),
        "w4": w4, "b4": b4,
    }
    # TODO(synk): fc03 (Linear(72, 18)) exists in __init__ but is unused in forward.


def _pad2(a, rows, cols, dtype=None):
    out = jnp.pad(a, ((0, rows - a.shape[0]), (0, cols - a.shape[1])))
    return out if dtype is None else out.astype(dtype)


def prepare_params(params):
    """Zero-pad feature dims to lane multiples and cast weights to bf16."""
    return {
        "w1": _pad2(params["w1"], P_IN, P_H1, jnp.bfloat16),
        "b1": _pad2(params["b1"], 1, P_H1),
        "w2": _pad2(params["w2"], P_H1, P_H2, jnp.bfloat16),
        "b2": _pad2(params["b2"], 1, P_H2),
        "w3": _pad2(params["w3"], P_H2, P_H3, jnp.bfloat16),
        "b3": _pad2(params["b3"], 1, P_H3),
        "bn_gamma": _pad2(params["bn_gamma"], 1, P_H3),
        "bn_beta": _pad2(params["bn_beta"], 1, P_H3),
        "w4": _pad2(params["w4"], P_H3, P_OUT, jnp.bfloat16),
        "b4": _pad2(params["b4"], 1, P_OUT),
    }


def _reference_forward(x_coordinate, params):
    """Pure-JAX f32 reference of the PyTorch forward (for tolerance check)."""
    B = x_coordinate.shape[0]
    x = x_coordinate.reshape(B, -1)
    h1 = x @ params["w1"] + params["b1"]
    h2 = jnp.maximum(h1 @ params["w2"] + params["b2"], 0.0)
    h3 = jnp.maximum(h2 @ params["w3"] + params["b3"], 0.0)
    mean = jnp.mean(h3, axis=0, keepdims=True)
    var = jnp.mean((h3 - mean) ** 2, axis=0, keepdims=True)
    h3n = (h3 - mean) * jax.lax.rsqrt(var + EPS) * params["bn_gamma"] + params["bn_beta"]
    out = h3n @ params["w4"] + params["b4"]
    return out.reshape(-1, 6, 3)


if __name__ == "__main__":
    key = jax.random.PRNGKey(0)
    k_params, k_x = jax.random.split(key)

    params = init_params(k_params)
    padded_params = prepare_params(params)

    # Input: batch of 8 coordinate sets, each (4, 3) -> flattens to 12 features.
    x = jax.random.normal(k_x, (8, 4, 3), dtype=jnp.float32)

    out = my_network_noimage_forward(x, padded_params)
    out = jax.block_until_ready(out)

    assert out.shape == (8, 6, 3), out.shape
    assert bool(jnp.all(jnp.isfinite(out)))

    # Loose tolerance: weights are streamed as bf16 (f32 accumulation).
    ref = _reference_forward(x, params)
    assert bool(jnp.all(jnp.abs(out - ref) <= 0.15 + 0.15 * jnp.abs(ref))), (
        float(jnp.max(jnp.abs(out - ref))))

    print("KERNEL_OK")
</pallas_src>

<mosaic_0001>
module attributes {stable_mosaic.version = 11 : i64} {
  func.func @_mlp_kernel(%arg0: memref<8x128xf32, #tpu.memory_space<vmem>>, %arg1: memref<128x1024xbf16, #tpu.memory_space<vmem>>, %arg2: memref<1x1024xf32, #tpu.memory_space<vmem>>, %arg3: memref<1024x512xbf16, #tpu.memory_space<vmem>>, %arg4: memref<1x512xf32, #tpu.memory_space<vmem>>, %arg5: memref<512x128xbf16, #tpu.memory_space<vmem>>, %arg6: memref<1x128xf32, #tpu.memory_space<vmem>>, %arg7: memref<1x128xf32, #tpu.memory_space<vmem>>, %arg8: memref<1x128xf32, #tpu.memory_space<vmem>>, %arg9: memref<128x128xbf16, #tpu.memory_space<vmem>>, %arg10: memref<1x128xf32, #tpu.memory_space<vmem>>, %arg11: memref<8x128xf32, #tpu.memory_space<vmem>>) attributes {dimension_semantics = [], scalar_prefetch = 0 : i64, scratch_operands = 0 : i64, tpu.core_type = #tpu.core_type<tc>} {
    %c0 = arith.constant 0 : index
    %c0_0 = arith.constant 0 : index
    %0 = vector.load %arg0[%c0, %c0_0] : memref<8x128xf32, #tpu.memory_space<vmem>>, vector<8x128xf32>
    %1 = arith.truncf %0 : vector<8x128xf32> to vector<8x128xbf16>
    %c0_1 = arith.constant 0 : index
    %c0_2 = arith.constant 0 : index
    %2 = vector.load %arg1[%c0_1, %c0_2] : memref<128x1024xbf16, #tpu.memory_space<vmem>>, vector<128x1024xbf16>
    %cst = arith.constant dense<0.000000e+00> : vector<8x1024xf32>
    %3 = tpu.matmul %1, %2, %cst {dimension_numbers = #tpu.dot_dimension_numbers<[1], [0], [0], [1], [0, 0, 1, 1], [], []>} : vector<8x128xbf16>, vector<128x1024xbf16>, vector<8x1024xf32> -> vector<8x1024xf32>
    %c0_3 = arith.constant 0 : index
    %c0_4 = arith.constant 0 : index
    %4 = vector.load %arg2[%c0_3, %c0_4] : memref<1x1024xf32, #tpu.memory_space<vmem>>, vector<1x1024xf32>
    %5 = vector.broadcast %4 : vector<1x1024xf32> to vector<8x1024xf32>
    %6 = arith.addf %3, %5 : vector<8x1024xf32>
    %7 = arith.truncf %6 : vector<8x1024xf32> to vector<8x1024xbf16>
    %c0_5 = arith.constant 0 : index
    %c0_6 = arith.constant 0 : index
    %8 = vector.load %arg3[%c0_5, %c0_6] : memref<1024x512xbf16, #tpu.memory_space<vmem>>, vector<1024x512xbf16>
    %cst_7 = arith.constant dense<0.000000e+00> : vector<8x512xf32>
    %9 = tpu.matmul %7, %8, %cst_7 {dimension_numbers = #tpu.dot_dimension_numbers<[1], [0], [0], [1], [0, 0, 1, 1], [], []>} : vector<8x1024xbf16>, vector<1024x512xbf16>, vector<8x512xf32> -> vector<8x512xf32>
    %c0_8 = arith.constant 0 : index
    %c0_9 = arith.constant 0 : index
    %10 = vector.load %arg4[%c0_8, %c0_9] : memref<1x512xf32, #tpu.memory_space<vmem>>, vector<1x512xf32>
    %11 = vector.broadcast %10 : vector<1x512xf32> to vector<8x512xf32>
    %12 = arith.addf %9, %11 : vector<8x512xf32>
    %cst_10 = arith.constant 0.000000e+00 : f32
    %13 = vector.broadcast %cst_10 : f32 to vector<8x512xf32>
    %14 = arith.maximumf %12, %13 : vector<8x512xf32>
    %15 = arith.truncf %14 : vector<8x512xf32> to vector<8x512xbf16>
    %c0_11 = arith.constant 0 : index
    %c0_12 = arith.constant 0 : index
    %16 = vector.load %arg5[%c0_11, %c0_12] : memref<512x128xbf16, #tpu.memory_space<vmem>>, vector<512x128xbf16>
    %cst_13 = arith.constant dense<0.000000e+00> : vector<8x128xf32>
    %17 = tpu.matmul %15, %16, %cst_13 {dimension_numbers = #tpu.dot_dimension_numbers<[1], [0], [0], [1], [0, 0, 1, 1], [], []>} : vector<8x512xbf16>, vector<512x128xbf16>, vector<8x128xf32> -> vector<8x128xf32>
    %c0_14 = arith.constant 0 : index
    %c0_15 = arith.constant 0 : index
    %18 = vector.load %arg6[%c0_14, %c0_15] : memref<1x128xf32, #tpu.memory_space<vmem>>, vector<1x128xf32>
    %19 = vector.broadcast %18 : vector<1x128xf32> to vector<8x128xf32>
    %20 = arith.addf %17, %19 : vector<8x128xf32>
    %cst_16 = arith.constant 0.000000e+00 : f32
    %21 = vector.broadcast %cst_16 : f32 to vector<8x128xf32>
    %22 = arith.maximumf %20, %21 : vector<8x128xf32>
    %cst_17 = arith.constant dense<0.000000e+00> : vector<128xf32>
    %23 = vector.multi_reduction <add>, %22, %cst_17 [0] : vector<8x128xf32> to vector<128xf32>
    %24 = vector.shape_cast %23 : vector<128xf32> to vector<1x128xf32>
    %cst_18 = arith.constant 8.000000e+00 : f32
    %25 = vector.broadcast %cst_18 : f32 to vector<1x128xf32>
    %26 = arith.divf %24, %25 : vector<1x128xf32>
    %27 = vector.broadcast %26 : vector<1x128xf32> to vector<8x128xf32>
    %28 = arith.subf %22, %27 : vector<8x128xf32>
    %29 = arith.mulf %28, %28 : vector<8x128xf32>
    %cst_19 = arith.constant dense<0.000000e+00> : vector<128xf32>
    %30 = vector.multi_reduction <add>, %29, %cst_19 [0] : vector<8x128xf32> to vector<128xf32>
    %31 = vector.shape_cast %30 : vector<128xf32> to vector<1x128xf32>
    %cst_20 = arith.constant 8.000000e+00 : f32
    %32 = vector.broadcast %cst_20 : f32 to vector<1x128xf32>
    %33 = arith.divf %31, %32 : vector<1x128xf32>
    %cst_21 = arith.constant 9.99999974E-6 : f32
    %34 = vector.broadcast %cst_21 : f32 to vector<1x128xf32>
    %35 = arith.addf %33, %34 : vector<1x128xf32>
    %36 = math.rsqrt %35 : vector<1x128xf32>
    %37 = vector.broadcast %36 : vector<1x128xf32> to vector<8x128xf32>
    %38 = arith.mulf %28, %37 : vector<8x128xf32>
    %c0_22 = arith.constant 0 : index
    %c0_23 = arith.constant 0 : index
    %39 = vector.load %arg7[%c0_22, %c0_23] : memref<1x128xf32, #tpu.memory_space<vmem>>, vector<1x128xf32>
    %40 = vector.broadcast %39 : vector<1x128xf32> to vector<8x128xf32>
    %41 = arith.mulf %38, %40 : vector<8x128xf32>
    %c0_24 = arith.constant 0 : index
    %c0_25 = arith.constant 0 : index
    %42 = vector.load %arg8[%c0_24, %c0_25] : memref<1x128xf32, #tpu.memory_space<vmem>>, vector<1x128xf32>
    %43 = vector.broadcast %42 : vector<1x128xf32> to vector<8x128xf32>
    %44 = arith.addf %41, %43 : vector<8x128xf32>
    %45 = arith.truncf %44 : vector<8x128xf32> to vector<8x128xbf16>
    %c0_26 = arith.constant 0 : index
    %c0_27 = arith.constant 0 : index
    %46 = vector.load %arg9[%c0_26, %c0_27] : memref<128x128xbf16, #tpu.memory_space<vmem>>, vector<128x128xbf16>
    %cst_28 = arith.constant dense<0.000000e+00> : vector<8x128xf32>
    %47 = tpu.matmul %45, %46, %cst_28 {dimension_numbers = #tpu.dot_dimension_numbers<[1], [0], [0], [1], [0, 0, 1, 1], [], []>} : vector<8x128xbf16>, vector<128x128xbf16>, vector<8x128xf32> -> vector<8x128xf32>
    %c0_29 = arith.constant 0 : index
    %c0_30 = arith.constant 0 : index
    %48 = vector.load %arg10[%c0_29, %c0_30] : memref<1x128xf32, #tpu.memory_space<vmem>>, vector<1x128xf32>
    %49 = vector.broadcast %48 : vector<1x128xf32> to vector<8x128xf32>
    %50 = arith.addf %47, %49 : vector<8x128xf32>
    %c0_31 = arith.constant 0 : index
    %c0_32 = arith.constant 0 : index
    %51 = vector.load %arg11[%c0_31, %c0_32] : memref<8x128xf32, #tpu.memory_space<vmem>>, vector<8x128xf32>
    tpu.vector_store %arg11[%c0_31, %c0_32], %50 {strides = array<i32>} : memref<8x128xf32, #tpu.memory_space<vmem>>, vector<8x128xf32>,
    return
  }
}

</mosaic_0001>

<llo_original>
// kernel: my_network_noimage_forward.1
$region0: #{my_network_noimage_forward.1}
  #allocation0 [shape = 'u32[]', space=smem, size = 0x4, offset = 0x4, fixed_abs, tag = 'smem constant byte address 0x4 - core index']
  #allocation1 [shape = 'u32[144,128]{1,0:T(1,128)}', space=vmem, size = 0x12000, scoped, tag = 'internal scratch']
  %s0 = inlined_call_operand.vmem [shape: f32[8,128], index: 0, kind: input, shape index: {}]
  %s1 = inlined_call_operand.hbm [shape: bf16[128,1024], index: 1, kind: input, shape index: {}]
  %s2 = inlined_call_operand.vmem [shape: f32[1,1024], index: 2, kind: input, shape index: {}]
  %s3 = inlined_call_operand.hbm [shape: bf16[1024,512], index: 3, kind: input, shape index: {}]
  %s4 = inlined_call_operand.vmem [shape: f32[1,512], index: 4, kind: input, shape index: {}]
  %s5 = inlined_call_operand.hbm [shape: bf16[512,128], index: 5, kind: input, shape index: {}]
  %s6 = inlined_call_operand.vmem [shape: f32[1,128], index: 6, kind: input, shape index: {}]
  %s7 = inlined_call_operand.vmem [shape: f32[1,128], index: 7, kind: input, shape index: {}]
  %s8 = inlined_call_operand.vmem [shape: f32[1,128], index: 8, kind: input, shape index: {}]
  %s9 = inlined_call_operand.vmem [shape: bf16[128,128], index: 9, kind: input, shape index: {}]
  %s10 = inlined_call_operand.vmem [shape: f32[1,128], index: 10, kind: input, shape index: {}]
  %s11 = inlined_call_operand.vmem [shape: f32[8,128], index: 11, kind: output, shape index: {}]
  %s12 = sld [smem:[#allocation0]]
  $region66: #{my_network_noimage_forward.1} parent=0
    _
  %s14 = ssub.s32 1, %s12
  %s15 = scalar_select 0, %s14, %s12
  $region1: #{my_network_noimage_forward.1} parent=0
    #allocation2 [shape = 'u8[262144]{0}', space=vmem, size = 0x40000, scoped, tag = 'input window, operand 1, single buffered']
    #allocation3 [shape = 's32[1]{0}', space=sflag, size = 0x4, scoped, tag = 'scoped memory for my_network_noimage_forward.1']
    #allocation4 [shape = 'u8[1048576]{0}', space=vmem, size = 0x100000, scoped, tag = 'input window, operand 3, single buffered']
    #allocation5 [shape = 's32[1]{0}', space=sflag, size = 0x4, scoped, tag = 'scoped memory for my_network_noimage_forward.1']
    #allocation6 [shape = 'u8[131072]{0}', space=vmem, size = 0x20000, scoped, tag = 'input window, operand 5, single buffered']
    %16 = vsyncpa [#allocation3], 0
    %17 = vsyncpa [#allocation5], 0
    // Predicated region
    $region2: #{my_network_noimage_forward.1} parent=1 // pred_check
      _
    $region3: #{my_network_noimage_forward.1} parent=1 // pred_check_branch
      %19 = sbr.rel (0) target = $region5
    $region4: #{my_network_noimage_forward.1} parent=1 // pred_region
      _
    $region5: #{my_network_noimage_forward.1} parent=1 // pred_fallthru
      _
    // Predicated region
    $region6: #{my_network_noimage_forward.1} parent=1 // pred_check
      _
    $region7: #{my_network_noimage_forward.1} parent=1 // pred_check_branch
      %21 = sbr.rel (0) target = $region9
    $region8: #{my_network_noimage_forward.1} parent=1 // pred_region
      %s23 = ssub.s32 8192, 8192
      %24 = vsyncadd [#allocation3], %s23
      %s25 = sshll.u32 [#allocation2], 4
      %s26 = int_to_ptr.vmem [resolvable:$true] %s25
      %31 = dma.hbm_to_vmem [thread:$0]  %s1, 8192, %s26, [#allocation3], 512, 512, 32
    $region9: #{my_network_noimage_forward.1} parent=1 // pred_fallthru
      _
    // Predicated region
    $region10: #{my_network_noimage_forward.1} parent=1 // pred_check
      _
    $region11: #{my_network_noimage_forward.1} parent=1 // pred_check_branch
      %33 = sbr.rel (0) target = $region13
    $region12: #{my_network_noimage_forward.1} parent=1 // pred_region
      _
    $region13: #{my_network_noimage_forward.1} parent=1 // pred_fallthru
      _
    // Predicated region
    $region14: #{my_network_noimage_forward.1} parent=1 // pred_check
      _
    $region15: #{my_network_noimage_forward.1} parent=1 // pred_check_branch
      %35 = sbr.rel (0) target = $region17
    $region16: #{my_network_noimage_forward.1} parent=1 // pred_region
      %s37 = ssub.s32 32768, 32768
      %38 = vsyncadd [#allocation5], %s37
      %s39 = sshll.u32 [#allocation4], 4
      %s40 = int_to_ptr.vmem [resolvable:$true] %s39
      %45 = dma.hbm_to_vmem [thread:$0]  %s3, 32768, %s40, [#allocation5], 256, 256, 16
    $region17: #{my_network_noimage_forward.1} parent=1 // pred_fallthru
      _
    // Predicated region
    $region18: #{my_network_noimage_forward.1} parent=1 // pred_check
      _
    $region19: #{my_network_noimage_forward.1} parent=1 // pred_check_branch
      %47 = sbr.rel (0) target = $region21
    $region20: #{my_network_noimage_forward.1} parent=1 // pred_region
      _
    $region21: #{my_network_noimage_forward.1} parent=1 // pred_fallthru
      _
    // Predicated region
    $region22: #{my_network_noimage_forward.1} parent=1 // pred_check
      _
    $region23: #{my_network_noimage_forward.1} parent=1 // pred_check_branch
      %49 = sbr.rel (0) target = $region25
    $region24: #{my_network_noimage_forward.1} parent=1 // pred_region
      %s51 = ssub.s32 4096, 4096
      %52 = vsyncadd [#allocation5], %s51
      %s53 = sshll.u32 [#allocation6], 4
      %s54 = int_to_ptr.vmem [resolvable:$true] %s53
      %59 = dma.hbm_to_vmem [thread:$0]  %s5, 4096, %s54, [#allocation5], 64, 64, 4
    $region25: #{my_network_noimage_forward.1} parent=1 // pred_fallthru
      _
    // Predicated region
    $region26: #{my_network_noimage_forward.1} parent=1 // pred_check
      _
    $region27: #{my_network_noimage_forward.1} parent=1 // pred_check_branch
      %61 = sbr.rel (0) target = $region29
    $region28: #{my_network_noimage_forward.1} parent=1 // pred_region
      _
    $region29: #{my_network_noimage_forward.1} parent=1 // pred_fallthru
      _
    // Predicated region
    $region30: #{my_network_noimage_forward.1} parent=1 // pred_check
      _
    $region31: #{my_network_noimage_forward.1} parent=1 // pred_check_branch
      %63 = sbr.rel (0) target = $region33
    $region32: #{my_network_noimage_forward.1} parent=1 // pred_region
      _
    $region33: #{my_network_noimage_forward.1} parent=1 // pred_fallthru
      _
    // Predicated region
    $region34: #{my_network_noimage_forward.1} parent=1 // pred_check
      _
    $region35: #{my_network_noimage_forward.1} parent=1 // pred_check_branch
      %65 = sbr.rel (0) target = $region37
    $region36: #{my_network_noimage_forward.1} parent=1 // pred_region
      _
    $region37: #{my_network_noimage_forward.1} parent=1 // pred_fallthru
      _
    // Predicated region
    $region38: #{my_network_noimage_forward.1} parent=1 // pred_check
      _
    $region39: #{my_network_noimage_forward.1} parent=1 // pred_check_branch
      %67 = sbr.rel (0) target = $region41
    $region40: #{my_network_noimage_forward.1} parent=1 // pred_region
      _
    $region41: #{my_network_noimage_forward.1} parent=1 // pred_fallthru
      _
    // Predicated region
    $region42: #{my_network_noimage_forward.1} parent=1 // pred_check
      _
    $region43: #{my_network_noimage_forward.1} parent=1 // pred_check_branch
      %69 = sbr.rel (0) target = $region45
    $region44: #{my_network_noimage_forward.1} parent=1 // pred_region
      _
    $region45: #{my_network_noimage_forward.1} parent=1 // pred_fallthru
      _
    // Predicated region
    $region46: #{my_network_noimage_forward.1} parent=1 // pred_check
      _
    $region47: #{my_network_noimage_forward.1} parent=1 // pred_check_branch
      %71 = sbr.rel (0) target = $region49
    $region48: #{my_network_noimage_forward.1} parent=1 // pred_region
      %72 = dma.done [#allocation3], 8192
    $region49: #{my_network_noimage_forward.1} parent=1 // pred_fallthru
      _
    // Predicated region
    $region50: #{my_network_noimage_forward.1} parent=1 // pred_check
      _
    $region51: #{my_network_noimage_forward.1} parent=1 // pred_check_branch
      %74 = sbr.rel (0) target = $region53
    $region52: #{my_network_noimage_forward.1} parent=1 // pred_region
      %75 = dma.done [#allocation5], 32768
    $region53: #{my_network_noimage_forward.1} parent=1 // pred_fallthru
      _
    // Predicated region
    $region54: #{my_network_noimage_forward.1} parent=1 // pred_check
      _
    $region55: #{my_network_noimage_forward.1} parent=1 // pred_check_branch
      %77 = sbr.rel (0) target = $region57
    $region56: #{my_network_noimage_forward.1} parent=1 // pred_region
      %78 = dma.done [#allocation5], 4096
    $region57: #{my_network_noimage_forward.1} parent=1 // pred_fallthru
      _
    %v80 = vld [vmem:[%s0] sm:$0xff]
    %v81 = vpack.c.bf16 %v80, %v80
    %v82 = vld [vmem:[#allocation2] sm:$0xff]
    %v83 = vld [vmem:[#allocation2 + $0x8] sm:$0xff]
    %v84 = vld [vmem:[#allocation2 + $0x10] sm:$0xff]
    %v85 = vld [vmem:[#allocation2 + $0x18] sm:$0xff]
    %v86 = vld [vmem:[#allocation2 + $0x20] sm:$0xff]
    %v87 = vld [vmem:[#allocation2 + $0x28] sm:$0xff]
    %v88 = vld [vmem:[#allocation2 + $0x30] sm:$0xff]
    %v89 = vld [vmem:[#allocation2 + $0x38] sm:$0xff]
    %v90 = vld [vmem:[#allocation2 + $0x40] sm:$0xff]
    %v91 = vld [vmem:[#allocation2 + $0x48] sm:$0xff]
    %v92 = vld [vmem:[#allocation2 + $0x50] sm:$0xff]
    %v93 = vld [vmem:[#allocation2 + $0x58] sm:$0xff]
    %v94 = vld [vmem:[#allocation2 + $0x60] sm:$0xff]
    %v95 = vld [vmem:[#allocation2 + $0x68] sm:$0xff]
    %v96 = vld [vmem:[#allocation2 + $0x70] sm:$0xff]
    %v97 = vld [vmem:[#allocation2 + $0x78] sm:$0xff]
    %v98 = vld [vmem:[#allocation2 + $0x80] sm:$0xff]
    %v99 = vld [vmem:[#allocation2 + $0x88] sm:$0xff]
    %v100 = vld [vmem:[#allocation2 + $0x90] sm:$0xff]
    %v101 = vld [vmem:[#allocation2 + $0x98] sm:$0xff]
    %v102 = vld [vmem:[#allocation2 + $0xa0] sm:$0xff]
    %v103 = vld [vmem:[#allocation2 + $0xa8] sm:$0xff]
    %v104 = vld [vmem:[#allocation2 + $0xb0] sm:$0xff]
    %v105 = vld [vmem:[#allocation2 + $0xb8] sm:$0xff]
    %v106 = vld [vmem:[#allocation2 + $0xc0] sm:$0xff]
    %v107 = vld [vmem:[#allocation2 + $0xc8] sm:$0xff]
    %v108 = vld [vmem:[#allocation2 + $0xd0] sm:$0xff]
    %v109 = vld [vmem:[#allocation2 + $0xd8] sm:$0xff]
    %v110 = vld [vmem:[#allocation2 + $0xe0] sm:$0xff]
    %v111 = vld [vmem:[#allocation2 + $0xe8] sm:$0xff]
    %v112 = vld [vmem:[#allocation2 + $0xf0] sm:$0xff]
    %v113 = vld [vmem:[#allocation2 + $0xf8] sm:$0xff]
    %v114 = vld [vmem:[#allocation2 + $0x100] sm:$0xff]
    %v115 = vld [vmem:[#allocation2 + $0x108] sm:$0xff]
    %v116 = vld [vmem:[#allocation2 + $0x110] sm:$0xff]
    %v117 = vld [vmem:[#allocation2 + $0x118] sm:$0xff]
    %v118 = vld [vmem:[#allocation2 + $0x120] sm:$0xff]
    %v119 = vld [vmem:[#allocation2 + $0x128] sm:$0xff]
    %v120 = vld [vmem:[#allocation2 + $0x130] sm:$0xff]
    %v121 = vld [vmem:[#allocation2 + $0x138] sm:$0xff]
    %v122 = vld [vmem:[#allocation2 + $0x140] sm:$0xff]
    %v123 = vld [vmem:[#allocation2 + $0x148] sm:$0xff]
    %v124 = vld [vmem:[#allocation2 + $0x150] sm:$0xff]
    %v125 = vld [vmem:[#allocation2 + $0x158] sm:$0xff]
    %v126 = vld [vmem:[#allocation2 + $0x160] sm:$0xff]
    %v127 = vld [vmem:[#allocation2 + $0x168] sm:$0xff]
    %v128 = vld [vmem:[#allocation2 + $0x170] sm:$0xff]
    %v129 = vld [vmem:[#allocation2 + $0x178] sm:$0xff]
    %v130 = vld [vmem:[#allocation2 + $0x180] sm:$0xff]
    %v131 = vld [vmem:[#allocation2 + $0x188] sm:$0xff]
    %v132 = vld [vmem:[#allocation2 + $0x190] sm:$0xff]
    %v133 = vld [vmem:[#allocation2 + $0x198] sm:$0xff]
    %v134 = vld [vmem:[#allocation2 + $0x1a0] sm:$0xff]
    %v135 = vld [vmem:[#allocation2 + $0x1a8] sm:$0xff]
    %v136 = vld [vmem:[#allocation2 + $0x1b0] sm:$0xff]
    %v137 = vld [vmem:[#allocation2 + $0x1b8] sm:$0xff]
    %v138 = vld [vmem:[#allocation2 + $0x1c0] sm:$0xff]
    %v139 = vld [vmem:[#allocation2 + $0x1c8] sm:$0xff]
    %v140 = vld [vmem:[#allocation2 + $0x1d0] sm:$0xff]
    %v141 = vld [vmem:[#allocation2 + $0x1d8] sm:$0xff]
    %v142 = vld [vmem:[#allocation2 + $0x1e0] sm:$0xff]
    %v143 = vld [vmem:[#allocation2 + $0x1e8] sm:$0xff]
    %v144 = vld [vmem:[#allocation2 + $0x1f0] sm:$0xff]
    %v145 = vld [vmem:[#allocation2 + $0x1f8] sm:$0xff]
    %v146 = vld [vmem:[%s2] sm:$0xff]
    %v148 = vlaneseq
    %v149 = vshrl.u32 %v148, 7
    %v150 = vsub.s32 0, %v149
    %v151 = vrot.slane %v146, %v150
    %v152 = vlaneseq
    %v153 = vshrl.u32 %v152, 7
    %v154 = vsub.s32 1, %v153
    %v155 = vrot.slane %v146, %v154
    %v156 = vlaneseq
    %v157 = vshrl.u32 %v156, 7
    %v158 = vsub.s32 2, %v157
    %v159 = vrot.slane %v146, %v158
    %v160 = vlaneseq
    %v161 = vshrl.u32 %v160, 7
    %v162 = vsub.s32 3, %v161
    %v163 = vrot.slane %v146, %v162
    %v164 = vlaneseq
    %v165 = vshrl.u32 %v164, 7
    %v166 = vsub.s32 4, %v165
    %v167 = vrot.slane %v146, %v166
    %v168 = vlaneseq
    %v169 = vshrl.u32 %v168, 7
    %v170 = vsub.s32 5, %v169
    %v171 = vrot.slane %v146, %v170
    %v172 = vlaneseq
    %v173 = vshrl.u32 %v172, 7
    %v174 = vsub.s32 6, %v173
    %v175 = vrot.slane %v146, %v174
    %v176 = vlaneseq
    %v177 = vshrl.u32 %v176, 7
    %v178 = vsub.s32 7, %v177
    %v179 = vrot.slane %v146, %v178
    %v252 = vunpack.c.l.b16 %v82
    %v253 = vunpack.c.h.b16 %v82
    %v254 = vunpack.c.l.b16 %v83
    %v255 = vunpack.c.h.b16 %v83
    %v256 = vunpack.c.l.b16 %v84
    %v257 = vunpack.c.h.b16 %v84
    %v258 = vunpack.c.l.b16 %v85
    %v259 = vunpack.c.h.b16 %v85
    %v260 = vunpack.c.l.b16 %v86
    %v261 = vunpack.c.h.b16 %v86
    %v262 = vunpack.c.l.b16 %v87
    %v263 = vunpack.c.h.b16 %v87
    %v264 = vunpack.c.l.b16 %v88
    %v265 = vunpack.c.h.b16 %v88
    %v266 = vunpack.c.l.b16 %v89
    %v267 = vunpack.c.h.b16 %v89
    %v268 = vunpack.c.l.b16 %v90
    %v269 = vunpack.c.h.b16 %v90
    %v270 = vunpack.c.l.b16 %v91
    %v271 = vunpack.c.h.b16 %v91
    %v272 = vunpack.c.l.b16 %v92
    %v273 = vunpack.c.h.b16 %v92
    %v274 = vunpack.c.l.b16 %v93
    %v275 = vunpack.c.h.b16 %v93
    %v276 = vunpack.c.l.b16 %v94
    %v277 = vunpack.c.h.b16 %v94
    %v278 = vunpack.c.l.b16 %v95
    %v279 = vunpack.c.h.b16 %v95
    %v280 = vunpack.c.l.b16 %v96
    %v281 = vunpack.c.h.b16 %v96
    %v282 = vunpack.c.l.b16 %v97
    %v283 = vunpack.c.h.b16 %v97
    %v284 = vunpack.c.l.b16 %v98
    %v285 = vunpack.c.h.b16 %v98
    %v286 = vunpack.c.l.b16 %v99
    %v287 = vunpack.c.h.b16 %v99
    %v288 = vunpack.c.l.b16 %v100
    %v289 = vunpack.c.h.b16 %v100
    %v290 = vunpack.c.l.b16 %v101
    %v291 = vunpack.c.h.b16 %v101
    %v292 = vunpack.c.l.b16 %v102
    %v293 = vunpack.c.h.b16 %v102
    %v294 = vunpack.c.l.b16 %v103
    %v295 = vunpack.c.h.b16 %v103
    %v296 = vunpack.c.l.b16 %v104
    %v297 = vunpack.c.h.b16 %v104
    %v298 = vunpack.c.l.b16 %v105
    %v299 = vunpack.c.h.b16 %v105
    %v300 = vunpack.c.l.b16 %v106
    %v301 = vunpack.c.h.b16 %v106
    %v302 = vunpack.c.l.b16 %v107
    %v303 = vunpack.c.h.b16 %v107
    %v304 = vunpack.c.l.b16 %v108
    %v305 = vunpack.c.h.b16 %v108
    %v306 = vunpack.c.l.b16 %v109
    %v307 = vunpack.c.h.b16 %v109
    %v308 = vunpack.c.l.b16 %v110
    %v309 = vunpack.c.h.b16 %v110
    %v310 = vunpack.c.l.b16 %v111
    %v311 = vunpack.c.h.b16 %v111
    %v312 = vunpack.c.l.b16 %v112
    %v313 = vunpack.c.h.b16 %v112
    %v314 = vunpack.c.l.b16 %v113
    %v315 = vunpack.c.h.b16 %v113
    %v316 = vunpack.c.l.b16 %v114
    %v317 = vunpack.c.h.b16 %v114
    %v318 = vunpack.c.l.b16 %v115
    %v319 = vunpack.c.h.b16 %v115
    %v320 = vunpack.c.l.b16 %v116
    %v321 = vunpack.c.h.b16 %v116
    %v322 = vunpack.c.l.b16 %v117
    %v323 = vunpack.c.h.b16 %v117
    %v324 = vunpack.c.l.b16 %v118
    %v325 = vunpack.c.h.b16 %v118
    %v326 = vunpack.c.l.b16 %v119
    %v327 = vunpack.c.h.b16 %v119
    %v328 = vunpack.c.l.b16 %v120
    %v329 = vunpack.c.h.b16 %v120
    %v330 = vunpack.c.l.b16 %v121
    %v331 = vunpack.c.h.b16 %v121
    %v332 = vunpack.c.l.b16 %v122
    %v333 = vunpack.c.h.b16 %v122
    %v334 = vunpack.c.l.b16 %v123
    %v335 = vunpack.c.h.b16 %v123
    %v336 = vunpack.c.l.b16 %v124
    %v337 = vunpack.c.h.b16 %v124
    %v338 = vunpack.c.l.b16 %v125
    %v339 = vunpack.c.h.b16 %v125
    %v340 = vunpack.c.l.b16 %v126
    %v341 = vunpack.c.h.b16 %v126
    %v342 = vunpack.c.l.b16 %v127
    %v343 = vunpack.c.h.b16 %v127
    %v344 = vunpack.c.l.b16 %v128
    %v345 = vunpack.c.h.b16 %v128
    %v346 = vunpack.c.l.b16 %v129
    %v347 = vunpack.c.h.b16 %v129
    %v348 = vunpack.c.l.b16 %v130
    %v349 = vunpack.c.h.b16 %v130
    %v350 = vunpack.c.l.b16 %v131
    %v351 = vunpack.c.h.b16 %v131
    %v352 = vunpack.c.l.b16 %v132
    %v353 = vunpack.c.h.b16 %v132
    %v354 = vunpack.c.l.b16 %v133
    %v355 = vunpack.c.h.b16 %v133
    %v356 = vunpack.c.l.b16 %v134
    %v357 = vunpack.c.h.b16 %v134
    %v358 = vunpack.c.l.b16 %v135
    %v359 = vunpack.c.h.b16 %v135
    %v360 = vunpack.c.l.b16 %v136
    %v361 = vunpack.c.h.b16 %v136
    %v362 = vunpack.c.l.b16 %v137
    %v363 = vunpack.c.h.b16 %v137
    %v364 = vunpack.c.l.b16 %v138
    %v365 = vunpack.c.h.b16 %v138
    %v366 = vunpack.c.l.b16 %v139
    %v367 = vunpack.c.h.b16 %v139
    %v368 = vunpack.c.l.b16 %v140
    %v369 = vunpack.c.h.b16 %v140
    %v370 = vunpack.c.l.b16 %v141
    %v371 = vunpack.c.h.b16 %v141
    %v372 = vunpack.c.l.b16 %v142
    %v373 = vunpack.c.h.b16 %v142
    %v374 = vunpack.c.l.b16 %v143
    %v375 = vunpack.c.h.b16 %v143
    %v376 = vunpack.c.l.b16 %v144
    %v377 = vunpack.c.h.b16 %v144
    %v378 = vunpack.c.l.b16 %v145
    %v379 = vunpack.c.h.b16 %v145
    %v380 = vpack.c.b16 %v260, %v252
    %v381 = vpack.c.b16 %v261, %v253
    %v382 = vpack.c.b16 %v262, %v254
    %v383 = vpack.c.b16 %v263, %v255
    %v384 = vpack.c.b16 %v264, %v256
    %v385 = vpack.c.b16 %v265, %v257
    %v386 = vpack.c.b16 %v266, %v258
    %v387 = vpack.c.b16 %v267, %v259
    %v388 = vpack.c.b16 %v276, %v268
    %v389 = vpack.c.b16 %v277, %v269
    %v390 = vpack.c.b16 %v278, %v270
    %v391 = vpack.c.b16 %v279, %v271
    %v392 = vpack.c.b16 %v280, %v272
    %v393 = vpack.c.b16 %v281, %v273
    %v394 = vpack.c.b16 %v282, %v274
    %v395 = vpack.c.b16 %v283, %v275
    %v396 = vpack.c.b16 %v292, %v284
    %v397 = vpack.c.b16 %v293, %v285
    %v398 = vpack.c.b16 %v294, %v286
    %v399 = vpack.c.b16 %v295, %v287
    %v400 = vpack.c.b16 %v296, %v288
    %v401 = vpack.c.b16 %v297, %v289
    %v402 = vpack.c.b16 %v298, %v290
    %v403 = vpack.c.b16 %v299, %v291
    %v404 = vpack.c.b16 %v308, %v300
    %v405 = vpack.c.b16 %v309, %v301
    %v406 = vpack.c.b16 %v310, %v302
    %v407 = vpack.c.b16 %v311, %v303
    %v408 = vpack.c.b16 %v312, %v304
    %v409 = vpack.c.b16 %v313, %v305
    %v410 = vpack.c.b16 %v314, %v306
    %v411 = vpack.c.b16 %v315, %v307
    %v412 = vpack.c.b16 %v324, %v316
    %v413 = vpack.c.b16 %v325, %v317
    %v414 = vpack.c.b16 %v326, %v318
    %v415 = vpack.c.b16 %v327, %v319
    %v416 = vpack.c.b16 %v328, %v320
    %v417 = vpack.c.b16 %v329, %v321
    %v418 = vpack.c.b16 %v330, %v322
    %v419 = vpack.c.b16 %v331, %v323
    %v420 = vpack.c.b16 %v340, %v332
    %v421 = vpack.c.b16 %v341, %v333
    %v422 = vpack.c.b16 %v342, %v334
    %v423 = vpack.c.b16 %v343, %v335
    %v424 = vpack.c.b16 %v344, %v336
    %v425 = vpack.c.b16 %v345, %v337
    %v426 = vpack.c.b16 %v346, %v338
    %v427 = vpack.c.b16 %v347, %v339
    %v428 = vpack.c.b16 %v356, %v348
    %v429 = vpack.c.b16 %v357, %v349
    %v430 = vpack.c.b16 %v358, %v350
    %v431 = vpack.c.b16 %v359, %v351
    %v432 = vpack.c.b16 %v360, %v352
    %v433 = vpack.c.b16 %v361, %v353
    %v434 = vpack.c.b16 %v362, %v354
    %v435 = vpack.c.b16 %v363, %v355
    %v436 = vpack.c.b16 %v372, %v364
    %v437 = vpack.c.b16 %v373, %v365
    %v438 = vpack.c.b16 %v374, %v366
    %v439 = vpack.c.b16 %v375, %v367
    %v440 = vpack.c.b16 %v376, %v368
    %v441 = vpack.c.b16 %v377, %v369
    %v442 = vpack.c.b16 %v378, %v370
    %v443 = vpack.c.b16 %v379, %v371
    %508 = vmatprep.subr.bf16.mxu0 %v381
    %509 = vmatpush1.bf16.msra.mxu0 %v380
    %510 = vmatprep.subr.bf16.mxu0 %v389
    %511 = vmatpush1.bf16.msra.mxu0 %v388
    %512 = vmatprep.subr.bf16.mxu0 %v397
    %513 = vmatpush1.bf16.msra.mxu0 %v396
    %514 = vmatprep.subr.bf16.mxu0 %v405
    %515 = vmatpush1.bf16.msra.mxu0 %v404
    %516 = vmatprep.subr.bf16.mxu0 %v413
    %517 = vmatpush1.bf16.msra.mxu0 %v412
    %518 = vmatprep.subr.bf16.mxu0 %v421
    %519 = vmatpush1.bf16.msra.mxu0 %v420
    %520 = vmatprep.subr.bf16.mxu0 %v429
    %521 = vmatpush1.bf16.msra.mxu0 %v428
    %522 = vmatprep.subr.bf16.mxu0 %v437
    %523 = vmatpush1.bf16.msra.mxu0 %v436
    %524 = vmatprep.subr.bf16.mxu0 0
    %525 = vmatpush1.bf16.msra.mxu0 0
    %526 = vmatprep.subr.bf16.mxu0 0
    %527 = vmatpush1.bf16.msra.mxu0 0
    %528 = vmatprep.subr.bf16.mxu0 0
    %529 = vmatpush1.bf16.msra.mxu0 0
    %530 = vmatprep.subr.bf16.mxu0 0
    %531 = vmatpush1.bf16.msra.mxu0 0
    %532 = vmatprep.subr.bf16.mxu0 0
    %533 = vmatpush1.bf16.msra.mxu0 0
    %534 = vmatprep.subr.bf16.mxu0 0
    %535 = vmatpush1.bf16.msra.mxu0 0
    %536 = vmatprep.subr.bf16.mxu0 0
    %537 = vmatpush1.bf16.msra.mxu0 0
    %538 = vmatprep.subr.bf16.mxu0 0
    %539 = vmatpush1.bf16.msra.mxu0 0
    %540 = vmatprep.mubr.bf16.mxu0 0
    %541 = vmatmul.mubr.bf16.gmra.mrb[0].mxu0 %v81
    %v542 = vpop.f32.mrb[0].mxu0
    %v543 = vadd.f32 %v151, %v542
    %v544 = vpop.f32.mrb[0].mxu0
    %v545 = vadd.f32 %v155, %v544
    %v546 = vpop.f32.mrb[0].mxu0
    %v547 = vpop.f32.mrb[0].mxu0
    %548 = vdwg.mxu0
    %549 = vmatprep.subr.bf16.mxu0 %v383
    %550 = vmatpush1.bf16.msra.mxu0 %v382
    %551 = vmatprep.subr.bf16.mxu0 %v391
    %552 = vmatpush1.bf16.msra.mxu0 %v390
    %553 = vmatprep.subr.bf16.mxu0 %v399
    %554 = vmatpush1.bf16.msra.mxu0 %v398
    %555 = vmatprep.subr.bf16.mxu0 %v407
    %556 = vmatpush1.bf16.msra.mxu0 %v406
    %557 = vmatprep.subr.bf16.mxu0 %v415
    %558 = vmatpush1.bf16.msra.mxu0 %v414
    %559 = vmatprep.subr.bf16.mxu0 %v423
    %560 = vmatpush1.bf16.msra.mxu0 %v422
    %561 = vmatprep.subr.bf16.mxu0 %v431
    %562 = vmatpush1.bf16.msra.mxu0 %v430
    %563 = vmatprep.subr.bf16.mxu0 %v439
    %564 = vmatpush1.bf16.msra.mxu0 %v438
    %565 = vmatprep.subr.bf16.mxu0 0
    %566 = vmatpush1.bf16.msra.mxu0 0
    %567 = vmatprep.subr.bf16.mxu0 0
    %568 = vmatpush1.bf16.msra.mxu0 0
    %569 = vmatprep.subr.bf16.mxu0 0
    %570 = vmatpush1.bf16.msra.mxu0 0
    %571 = vmatprep.subr.bf16.mxu0 0
    %572 = vmatpush1.bf16.msra.mxu0 0
    %573 = vmatprep.subr.bf16.mxu0 0
    %574 = vmatpush1.bf16.msra.mxu0 0
    %575 = vmatprep.subr.bf16.mxu0 0
    %576 = vmatpush1.bf16.msra.mxu0 0
    %577 = vmatprep.subr.bf16.mxu0 0
    %578 = vmatpush1.bf16.msra.mxu0 0
    %579 = vmatprep.subr.bf16.mxu0 0
    %580 = vmatpush1.bf16.msra.mxu0 0
    %581 = vmatprep.mubr.bf16.mxu0 0
    %582 = vmatmul.mubr.bf16.gmra.mrb[0].mxu0 %v81
    %v583 = vpop.f32.mrb[0].mxu0
    %v584 = vadd.f32 %v159, %v583
    %v585 = vpop.f32.mrb[0].mxu0
    %v586 = vadd.f32 %v163, %v585
    %v587 = vpop.f32.mrb[0].mxu0
    %v588 = vpop.f32.mrb[0].mxu0
    %589 = vdwg.mxu0
    %590 = vmatprep.subr.bf16.mxu0 %v385
    %591 = vmatpush1.bf16.msra.mxu0 %v384
    %592 = vmatprep.subr.bf16.mxu0 %v393
    %593 = vmatpush1.bf16.msra.mxu0 %v392
    %594 = vmatprep.subr.bf16.mxu0 %v401
    %595 = vmatpush1.bf16.msra.mxu0 %v400
    %596 = vmatprep.subr.bf16.mxu0 %v409
    %597 = vmatpush1.bf16.msra.mxu0 %v408
    %598 = vmatprep.subr.bf16.mxu0 %v417
    %599 = vmatpush1.bf16.msra.mxu0 %v416
    %600 = vmatprep.subr.bf16.mxu0 %v425
    %601 = vmatpush1.bf16.msra.mxu0 %v424
    %602 = vmatprep.subr.bf16.mxu0 %v433
    %603 = vmatpush1.bf16.msra.mxu0 %v432
    %604 = vmatprep.subr.bf16.mxu0 %v441
    %605 = vmatpush1.bf16.msra.mxu0 %v440
    %606 = vmatprep.subr.bf16.mxu0 0
    %607 = vmatpush1.bf16.msra.mxu0 0
    %608 = vmatprep.subr.bf16.mxu0 0
    %609 = vmatpush1.bf16.msra.mxu0 0
    %610 = vmatprep.subr.bf16.mxu0 0
    %611 = vmatpush1.bf16.msra.mxu0 0
    %612 = vmatprep.subr.bf16.mxu0 0
    %613 = vmatpush1.bf16.msra.mxu0 0
    %614 = vmatprep.subr.bf16.mxu0 0
    %615 = vmatpush1.bf16.msra.mxu0 0
    %616 = vmatprep.subr.bf16.mxu0 0
    %617 = vmatpush1.bf16.msra.mxu0 0
    %618 = vmatprep.subr.bf16.mxu0 0
    %619 = vmatpush1.bf16.msra.mxu0 0
    %620 = vmatprep.subr.bf16.mxu0 0
    %621 = vmatpush1.bf16.msra.mxu0 0
    %622 = vmatprep.mubr.bf16.mxu0 0
    %623 = vmatmul.mubr.bf16.gmra.mrb[0].mxu0 %v81
    %v624 = vpop.f32.mrb[0].mxu0
    %v625 = vadd.f32 %v167, %v624
    %v626 = vpop.f32.mrb[0].mxu0
    %v627 = vadd.f32 %v171, %v626
    %v628 = vpop.f32.mrb[0].mxu0
    %v629 = vpop.f32.mrb[0].mxu0
    %630 = vdwg.mxu0
    %631 = vmatprep.subr.bf16.mxu0 %v387
    %632 = vmatpush1.bf16.msra.mxu0 %v386
    %633 = vmatprep.subr.bf16.mxu0 %v395
    %634 = vmatpush1.bf16.msra.mxu0 %v394
    %635 = vmatprep.subr.bf16.mxu0 %v403
    %636 = vmatpush1.bf16.msra.mxu0 %v402
    %637 = vmatprep.subr.bf16.mxu0 %v411
    %638 = vmatpush1.bf16.msra.mxu0 %v410
    %639 = vmatprep.subr.bf16.mxu0 %v419
    %640 = vmatpush1.bf16.msra.mxu0 %v418
    %641 = vmatprep.subr.bf16.mxu0 %v427
    %642 = vmatpush1.bf16.msra.mxu0 %v426
    %643 = vmatprep.subr.bf16.mxu0 %v435
    %644 = vmatpush1.bf16.msra.mxu0 %v434
    %645 = vmatprep.subr.bf16.mxu0 %v443
    %646 = vmatpush1.bf16.msra.mxu0 %v442
    %647 = vmatprep.subr.bf16.mxu0 0
    %648 = vmatpush1.bf16.msra.mxu0 0
    %649 = vmatprep.subr.bf16.mxu0 0
    %650 = vmatpush1.bf16.msra.mxu0 0
    %651 = vmatprep.subr.bf16.mxu0 0
    %652 = vmatpush1.bf16.msra.mxu0 0
    %653 = vmatprep.subr.bf16.mxu0 0
    %654 = vmatpush1.bf16.msra.mxu0 0
    %655 = vmatprep.subr.bf16.mxu0 0
    %656 = vmatpush1.bf16.msra.mxu0 0
    %657 = vmatprep.subr.bf16.mxu0 0
    %658 = vmatpush1.bf16.msra.mxu0 0
    %659 = vmatprep.subr.bf16.mxu0 0
    %660 = vmatpush1.bf16.msra.mxu0 0
    %661 = vmatprep.subr.bf16.mxu0 0
    %662 = vmatpush1.bf16.msra.mxu0 0
    %663 = vmatprep.mubr.bf16.mxu0 0
    %664 = vmatmul.mubr.bf16.gmra.mrb[0].mxu0 %v81
    %v665 = vpop.f32.mrb[0].mxu0
    %v666 = vadd.f32 %v175, %v665
    %v667 = vpop.f32.mrb[0].mxu0
    %v668 = vadd.f32 %v179, %v667
    %v669 = vpop.f32.mrb[0].mxu0
    %v670 = vpop.f32.mrb[0].mxu0
    %671 = vdwg.mxu0
    %v672 = vpack.c.bf16 %v543, %v543
    %v673 = vpack.c.bf16 %v545, %v545
    %v674 = vpack.c.bf16 %v584, %v584
    %v675 = vpack.c.bf16 %v586, %v586
    %v676 = vpack.c.bf16 %v625, %v625
    %v677 = vpack.c.bf16 %v627, %v627
    %v678 = vpack.c.bf16 %v666, %v666
    %v679 = vpack.c.bf16 %v668, %v668
    %v680 = vld [vmem:[#allocation4] sm:$0xff]
    %v681 = vld [vmem:[#allocation4 + $0x8] sm:$0xff]
    %v682 = vld [vmem:[#allocation4 + $0x10] sm:$0xff]
    %v683 = vld [vmem:[#allocation4 + $0x18] sm:$0xff]
    %v684 = vld [vmem:[#allocation4 + $0x20] sm:$0xff]
    %v685 = vld [vmem:[#allocation4 + $0x28] sm:$0xff]
    %v686 = vld [vmem:[#allocation4 + $0x30] sm:$0xff]
    %v687 = vld [vmem:[#allocation4 + $0x38] sm:$0xff]
    %v688 = vld [vmem:[#allocation4 + $0x40] sm:$0xff]
    %v689 = vld [vmem:[#allocation4 + $0x48] sm:$0xff]
    %v690 = vld [vmem:[#allocation4 + $0x50] sm:$0xff]
    %v691 = vld [vmem:[#allocation4 + $0x58] sm:$0xff]
    %v692 = vld [vmem:[#allocation4 + $0x60] sm:$0xff]
    %v693 = vld [vmem:[#allocation4 + $0x68] sm:$0xff]
    %v694 = vld [vmem:[#allocation4 + $0x70] sm:$0xff]
    %v695 = vld [vmem:[#allocation4 + $0x78] sm:$0xff]
    %v696 = vld [vmem:[#allocation4 + $0x80] sm:$0xff]
    %v697 = vld [vmem:[#allocation4 + $0x88] sm:$0xff]
    %v698 = vld [vmem:[#allocation4 + $0x90] sm:$0xff]
    %v699 = vld [vmem:[#allocation4 + $0x98] sm:$0xff]
    %v700 = vld [vmem:[#allocation4 + $0xa0] sm:$0xff]
    %v701 = vld [vmem:[#allocation4 + $0xa8] sm:$0xff]
    %v702 = vld [vmem:[#allocation4 + $0xb0] sm:$0xff]
    %v703 = vld [vmem:[#allocation4 + $0xb8] sm:$0xff]
    %v704 = vld [vmem:[#allocation4 + $0xc0] sm:$0xff]
    %v705 = vld [vmem:[#allocation4 + $0xc8] sm:$0xff]
    %v706 = vld [vmem:[#allocation4 + $0xd0] sm:$0xff]
    %v707 = vld [vmem:[#allocation4 + $0xd8] sm:$0xff]
    %v708 = vld [vmem:[#allocation4 + $0xe0] sm:$0xff]
    %v709 = vld [vmem:[#allocation4 + $0xe8] sm:$0xff]
    %v710 = vld [vmem:[#allocation4 + $0xf0] sm:$0xff]
    %v711 = vld [vmem:[#allocation4 + $0xf8] sm:$0xff]
    %v712 = vld [vmem:[#allocation4 + $0x100] sm:$0xff]
    %v713 = vld [vmem:[#allocation4 + $0x108] sm:$0xff]
    %v714 = vld [vmem:[#allocation4 + $0x110] sm:$0xff]
    %v715 = vld [vmem:[#allocation4 + $0x118] sm:$0xff]
    %v716 = vld [vmem:[#allocation4 + $0x120] sm:$0xff]
    %v717 = vld [vmem:[#allocation4 + $0x128] sm:$0xff]
    %v718 = vld [vmem:[#allocation4 + $0x130] sm:$0xff]
    %v719 = vld [vmem:[#allocation4 + $0x138] sm:$0xff]
    %v720 = vld [vmem:[#allocation4 + $0x140] sm:$0xff]
    %v721 = vld [vmem:[#allocation4 + $0x148] sm:$0xff]
    %v722 = vld [vmem:[#allocation4 + $0x150] sm:$0xff]
    %v723 = vld [vmem:[#allocation4 + $0x158] sm:$0xff]
    %v724 = vld [vmem:[#allocation4 + $0x160] sm:$0xff]
    %v725 = vld [vmem:[#allocation4 + $0x168] sm:$0xff]
    %v726 = vld [vmem:[#allocation4 + $0x170] sm:$0xff]
    %v727 = vld [vmem:[#allocation4 + $0x178] sm:$0xff]
    %v728 = vld [vmem:[#allocation4 + $0x180] sm:$0xff]
    %v729 = vld [vmem:[#allocation4 + $0x188] sm:$0xff]
    %v730 = vld [vmem:[#allocation4 + $0x190] sm:$0xff]
    %v731 = vld [vmem:[#allocation4 + $0x198] sm:$0xff]
    %v732 = vld [vmem:[#allocation4 + $0x1a0] sm:$0xff]
    %v733 = vld [vmem:[#allocation4 + $0x1a8] sm:$0xff]
    %v734 = vld [vmem:[#allocation4 + $0x1b0] sm:$0xff]
    %v735 = vld [vmem:[#allocation4 + $0x1b8] sm:$0xff]
    %v736 = vld [vmem:[#allocation4 + $0x1c0] sm:$0xff]
    %v737 = vld [vmem:[#allocation4 + $0x1c8] sm:$0xff]
    %v738 = vld [vmem:[#allocation4 + $0x1d0] sm:$0xff]
    %v739 = vld [vmem:[#allocation4 + $0x1d8] sm:$0xff]
    %v740 = vld [vmem:[#allocation4 + $0x1e0] sm:$0xff]
    %v741 = vld [vmem:[#allocation4 + $0x1e8] sm:$0xff]
    %v742 = vld [vmem:[#allocation4 + $0x1f0] sm:$0xff]
    %v743 = vld [vmem:[#allocation4 + $0x1f8] sm:$0xff]
    %v744 = vld [vmem:[#allocation4 + $0x200] sm:$0xff]
    %v745 = vld [vmem:[#allocation4 + $0x208] sm:$0xff]
    %v746 = vld [vmem:[#allocation4 + $0x210] sm:$0xff]
    %v747 = vld [vmem:[#allocation4 + $0x218] sm:$0xff]
    %v748 = vld [vmem:[#allocation4 + $0x220] sm:$0xff]
    %v749 = vld [vmem:[#allocation4 + $0x228] sm:$0xff]
    %v750 = vld [vmem:[#allocation4 + $0x230] sm:$0xff]
    %v751 = vld [vmem:[#allocation4 + $0x238] sm:$0xff]
    %v752 = vld [vmem:[#allocation4 + $0x240] sm:$0xff]
    %v753 = vld [vmem:[#allocation4 + $0x248] sm:$0xff]
    %v754 = vld [vmem:[#allocation4 + $0x250] sm:$0xff]
    %v755 = vld [vmem:[#allocation4 + $0x258] sm:$0xff]
    %v756 = vld [vmem:[#allocation4 + $0x260] sm:$0xff]
    %v757 = vld [vmem:[#allocation4 + $0x268] sm:$0xff]
    %v758 = vld [vmem:[#allocation4 + $0x270] sm:$0xff]
    %v759 = vld [vmem:[#allocation4 + $0x278] sm:$0xff]
    %v760 = vld [vmem:[#allocation4 + $0x280] sm:$0xff]
    %v761 = vld [vmem:[#allocation4 + $0x288] sm:$0xff]
    %v762 = vld [vmem:[#allocation4 + $0x290] sm:$0xff]
    %v763 = vld [vmem:[#allocation4 + $0x298] sm:$0xff]
    %v764 = vld [vmem:[#allocation4 + $0x2a0] sm:$0xff]
    %v765 = vld [vmem:[#allocation4 + $0x2a8] sm:$0xff]
    %v766 = vld [vmem:[#allocation4 + $0x2b0] sm:$0xff]
    %v767 = vld [vmem:[#allocation4 + $0x2b8] sm:$0xff]
    %v768 = vld [vmem:[#allocation4 + $0x2c0] sm:$0xff]
    %v769 = vld [vmem:[#allocation4 + $0x2c8] sm:$0xff]
    %v770 = vld [vmem:[#allocation4 + $0x2d0] sm:$0xff]
    %v771 = vld [vmem:[#allocation4 + $0x2d8] sm:$0xff]
    %v772 = vld [vmem:[#allocation4 + $0x2e0] sm:$0xff]
    %v773 = vld [vmem:[#allocation4 + $0x2e8] sm:$0xff]
    %v774 = vld [vmem:[#allocation4 + $0x2f0] sm:$0xff]
    %v775 = vld [vmem:[#allocation4 + $0x2f8] sm:$0xff]
    %v776 = vld [vmem:[#allocation4 + $0x300] sm:$0xff]
    %v777 = vld [vmem:[#allocation4 + $0x308] sm:$0xff]
    %v778 = vld [vmem:[#allocation4 + $0x310] sm:$0xff]
    %v779 = vld [vmem:[#allocation4 + $0x318] sm:$0xff]
    %v780 = vld [vmem:[#allocation4 + $0x320] sm:$0xff]
    %v781 = vld [vmem:[#allocation4 + $0x328] sm:$0xff]
    %v782 = vld [vmem:[#allocation4 + $0x330] sm:$0xff]
    %v783 = vld [vmem:[#allocation4 + $0x338] sm:$0xff]
    %v784 = vld [vmem:[#allocation4 + $0x340] sm:$0xff]
    %v785 = vld [vmem:[#allocation4 + $0x348] sm:$0xff]
    %v786 = vld [vmem:[#allocation4 + $0x350] sm:$0xff]
    %v787 = vld [vmem:[#allocation4 + $0x358] sm:$0xff]
    %v788 = vld [vmem:[#allocation4 + $0x360] sm:$0xff]
    %v789 = vld [vmem:[#allocation4 + $0x368] sm:$0xff]
    %v790 = vld [vmem:[#allocation4 + $0x370] sm:$0xff]
    %v791 = vld [vmem:[#allocation4 + $0x378] sm:$0xff]
    %v792 = vld [vmem:[#allocation4 + $0x380] sm:$0xff]
    %v793 = vld [vmem:[#allocation4 + $0x388] sm:$0xff]
    %v794 = vld [vmem:[#allocation4 + $0x390] sm:$0xff]
    %v795 = vld [vmem:[#allocation4 + $0x398] sm:$0xff]
    %v796 = vld [vmem:[#allocation4 + $0x3a0] sm:$0xff]
    %v797 = vld [vmem:[#allocation4 + $0x3a8] sm:$0xff]
    %v798 = vld [vmem:[#allocation4 + $0x3b0] sm:$0xff]
    %v799 = vld [vmem:[#allocation4 + $0x3b8] sm:$0xff]
    %v800 = vld [vmem:[#allocation4 + $0x3c0] sm:$0xff]
    %v801 = vld [vmem:[#allocation4 + $0x3c8] sm:$0xff]
    %v802 = vld [vmem:[#allocation4 + $0x3d0] sm:$0xff]
    %v803 = vld [vmem:[#allocation4 + $0x3d8] sm:$0xff]
    %v804 = vld [vmem:[#allocation4 + $0x3e0] sm:$0xff]
    %v805 = vld [vmem:[#allocation4 + $0x3e8] sm:$0xff]
    %v806 = vld [vmem:[#allocation4 + $0x3f0] sm:$0xff]
    %v807 = vld [vmem:[#allocation4 + $0x3f8] sm:$0xff]
    %v808 = vld [vmem:[#allocation4 + $0x400] sm:$0xff]
    %v809 = vld [vmem:[#allocation4 + $0x408] sm:$0xff]
    %v810 = vld [vmem:[#allocation4 + $0x410] sm:$0xff]
    %v811 = vld [vmem:[#allocation4 + $0x418] sm:$0xff]
    %v812 = vld [vmem:[#allocation4 + $0x420] sm:$0xff]
    %v813 = vld [vmem:[#allocation4 + $0x428] sm:$0xff]
    %v814 = vld [vmem:[#allocation4 + $0x430] sm:$0xff]
    %v815 = vld [vmem:[#allocation4 + $0x438] sm:$0xff]
    %v816 = vld [vmem:[#allocation4 + $0x440] sm:$0xff]
    %v817 = vld [vmem:[#allocation4 + $0x448] sm:$0xff]
    %v818 = vld [vmem:[#allocation4 + $0x450] sm:$0xff]
    %v819 = vld [vmem:[#allocation4 + $0x458] sm:$0xff]
    %v820 = vld [vmem:[#allocation4 + $0x460] sm:$0xff]
    %v821 = vld [vmem:[#allocation4 + $0x468] sm:$0xff]
    %v822 = vld [vmem:[#allocation4 + $0x470] sm:$0xff]
    %v823 = vld [vmem:[#allocation4 + $0x478] sm:$0xff]
    %v824 = vld [vmem:[#allocation4 + $0x480] sm:$0xff]
    %v825 = vld [vmem:[#allocation4 + $0x488] sm:$0xff]
    %v826 = vld [vmem:[#allocation4 + $0x490] sm:$0xff]
    %v827 = vld [vmem:[#allocation4 + $0x498] sm:$0xff]
    %v828 = vld [vmem:[#allocation4 + $0x4a0] sm:$0xff]
    %v829 = vld [vmem:[#allocation4 + $0x4a8] sm:$0xff]
    %v830 = vld [vmem:[#allocation4 + $0x4b0] sm:$0xff]
    %v831 = vld [vmem:[#allocation4 + $0x4b8] sm:$0xff]
    %v832 = vld [vmem:[#allocation4 + $0x4c0] sm:$0xff]
    %v833 = vld [vmem:[#allocation4 + $0x4c8] sm:$0xff]
    %v834 = vld [vmem:[#allocation4 + $0x4d0] sm:$0xff]
    %v835 = vld [vmem:[#allocation4 + $0x4d8] sm:$0xff]
    %v836 = vld [vmem:[#allocation4 + $0x4e0] sm:$0xff]
    %v837 = vld [vmem:[#allocation4 + $0x4e8] sm:$0xff]
    %v838 = vld [vmem:[#allocation4 + $0x4f0] sm:$0xff]
    %v839 = vld [vmem:[#allocation4 + $0x4f8] sm:$0xff]
    %v840 = vld [vmem:[#allocation4 + $0x500] sm:$0xff]
    %v841 = vld [vmem:[#allocation4 + $0x508] sm:$0xff]
    %v842 = vld [vmem:[#allocation4 + $0x510] sm:$0xff]
    %v843 = vld [vmem:[#allocation4 + $0x518] sm:$0xff]
    %v844 = vld [vmem:[#allocation4 + $0x520] sm:$0xff]
    %v845 = vld [vmem:[#allocation4 + $0x528] sm:$0xff]
    %v846 = vld [vmem:[#allocation4 + $0x530] sm:$0xff]
    %v847 = vld [vmem:[#allocation4 + $0x538] sm:$0xff]
    %v848 = vld [vmem:[#allocation4 + $0x540] sm:$0xff]
    %v849 = vld [vmem:[#allocation4 + $0x548] sm:$0xff]
    %v850 = vld [vmem:[#allocation4 + $0x550] sm:$0xff]
    %v851 = vld [vmem:[#allocation4 + $0x558] sm:$0xff]
    %v852 = vld [vmem:[#allocation4 + $0x560] sm:$0xff]
    %v853 = vld [vmem:[#allocation4 + $0x568] sm:$0xff]
    %v854 = vld [vmem:[#allocation4 + $0x570] sm:$0xff]
    %v855 = vld [vmem:[#allocation4 + $0x578] sm:$0xff]
    %v856 = vld [vmem:[#allocation4 + $0x580] sm:$0xff]
    %v857 = vld [vmem:[#allocation4 + $0x588] sm:$0xff]
    %v858 = vld [vmem:[#allocation4 + $0x590] sm:$0xff]
    %v859 = vld [vmem:[#allocation4 + $0x598] sm:$0xff]
    %v860 = vld [vmem:[#allocation4 + $0x5a0] sm:$0xff]
    %v861 = vld [vmem:[#allocation4 + $0x5a8] sm:$0xff]
    %v862 = vld [vmem:[#allocation4 + $0x5b0] sm:$0xff]
    %v863 = vld [vmem:[#allocation4 + $0x5b8] sm:$0xff]
    %v864 = vld [vmem:[#allocation4 + $0x5c0] sm:$0xff]
    %v865 = vld [vmem:[#allocation4 + $0x5c8] sm:$0xff]
    %v866 = vld [vmem:[#allocation4 + $0x5d0] sm:$0xff]
    %v867 = vld [vmem:[#allocation4 + $0x5d8] sm:$0xff]
    %v868 = vld [vmem:[#allocation4 + $0x5e0] sm:$0xff]
    %v869 = vld [vmem:[#allocation4 + $0x5e8] sm:$0xff]
    %v870 = vld [vmem:[#allocation4 + $0x5f0] sm:$0xff]
    %v871 = vld [vmem:[#allocation4 + $0x5f8] sm:$0xff]
    %v872 = vld [vmem:[#allocation4 + $0x600] sm:$0xff]
    %v873 = vld [vmem:[#allocation4 + $0x608] sm:$0xff]
    %v874 = vld [vmem:[#allocation4 + $0x610] sm:$0xff]
    %v875 = vld [vmem:[#allocation4 + $0x618] sm:$0xff]
    %v876 = vld [vmem:[#allocation4 + $0x620] sm:$0xff]
    %v877 = vld [vmem:[#allocation4 + $0x628] sm:$0xff]
    %v878 = vld [vmem:[#allocation4 + $0x630] sm:$0xff]
    %v879 = vld [vmem:[#allocation4 + $0x638] sm:$0xff]
    %v880 = vld [vmem:[#allocation4 + $0x640] sm:$0xff]
    %v881 = vld [vmem:[#allocation4 + $0x648] sm:$0xff]
    %v882 = vld [vmem:[#allocation4 + $0x650] sm:$0xff]
    %v883 = vld [vmem:[#allocation4 + $0x658] sm:$0xff]
    %v884 = vld [vmem:[#allocation4 + $0x660] sm:$0xff]
    %v885 = vld [vmem:[#allocation4 + $0x668] sm:$0xff]
    %v886 = vld [vmem:[#allocation4 + $0x670] sm:$0xff]
    %v887 = vld [vmem:[#allocation4 + $0x678] sm:$0xff]
    %v888 = vld [vmem:[#allocation4 + $0x680] sm:$0xff]
    %v889 = vld [vmem:[#allocation4 + $0x688] sm:$0xff]
    %v890 = vld [vmem:[#allocation4 + $0x690] sm:$0xff]
    %v891 = vld [vmem:[#allocation4 + $0x698] sm:$0xff]
    %v892 = vld [vmem:[#allocation4 + $0x6a0] sm:$0xff]
    %v893 = vld [vmem:[#allocation4 + $0x6a8] sm:$0xff]
    %v894 = vld [vmem:[#allocation4 + $0x6b0] sm:$0xff]
    %v895 = vld [vmem:[#allocation4 + $0x6b8] sm:$0xff]
    %v896 = vld [vmem:[#allocation4 + $0x6c0] sm:$0xff]
    %v897 = vld [vmem:[#allocation4 + $0x6c8] sm:$0xff]
    %v898 = vld [vmem:[#allocation4 + $0x6d0] sm:$0xff]
    %v899 = vld [vmem:[#allocation4 + $0x6d8] sm:$0xff]
    %v900 = vld [vmem:[#allocation4 + $0x6e0] sm:$0xff]
    %v901 = vld [vmem:[#allocation4 + $0x6e8] sm:$0xff]
    %v902 = vld [vmem:[#allocation4 + $0x6f0] sm:$0xff]
    %v903 = vld [vmem:[#allocation4 + $0x6f8] sm:$0xff]
    %v904 = vld [vmem:[#allocation4 + $0x700] sm:$0xff]
    %v905 = vld [vmem:[#allocation4 + $0x708] sm:$0xff]
    %v906 = vld [vmem:[#allocation4 + $0x710] sm:$0xff]
    %v907 = vld [vmem:[#allocation4 + $0x718] sm:$0xff]
    %v908 = vld [vmem:[#allocation4 + $0x720] sm:$0xff]
    %v909 = vld [vmem:[#allocation4 + $0x728] sm:$0xff]
    %v910 = vld [vmem:[#allocation4 + $0x730] sm:$0xff]
    %v911 = vld [vmem:[#allocation4 + $0x738] sm:$0xff]
    %v912 = vld [vmem:[#allocation4 + $0x740] sm:$0xff]
    %v913 = vld [vmem:[#allocation4 + $0x748] sm:$0xff]
    %v914 = vld [vmem:[#allocation4 + $0x750] sm:$0xff]
    %v915 = vld [vmem:[#allocation4 + $0x758] sm:$0xff]
    %v916 = vld [vmem:[#allocation4 + $0x760] sm:$0xff]
    %v917 = vld [vmem:[#allocation4 + $0x768] sm:$0xff]
    %v918 = vld [vmem:[#allocation4 + $0x770] sm:$0xff]
    %v919 = vld [vmem:[#allocation4 + $0x778] sm:$0xff]
    %v920 = vld [vmem:[#allocation4 + $0x780] sm:$0xff]
    %v921 = vld [vmem:[#allocation4 + $0x788] sm:$0xff]
    %v922 = vld [vmem:[#allocation4 + $0x790] sm:$0xff]
    %v923 = vld [vmem:[#allocation4 + $0x798] sm:$0xff]
    %v924 = vld [vmem:[#allocation4 + $0x7a0] sm:$0xff]
    %v925 = vld [vmem:[#allocation4 + $0x7a8] sm:$0xff]
    %v926 = vld [vmem:[#allocation4 + $0x7b0] sm:$0xff]
    %v927 = vld [vmem:[#allocation4 + $0x7b8] sm:$0xff]
    %v928 = vld [vmem:[#allocation4 + $0x7c0] sm:$0xff]
    %v929 = vld [vmem:[#allocation4 + $0x7c8] sm:$0xff]
    %v930 = vld [vmem:[#allocation4 + $0x7d0] sm:$0xff]
    %v931 = vld [vmem:[#allocation4 + $0x7d8] sm:$0xff]
    %v932 = vld [vmem:[#allocation4 + $0x7e0] sm:$0xff]
    %v933 = vld [vmem:[#allocation4 + $0x7e8] sm:$0xff]
    %v934 = vld [vmem:[#allocation4 + $0x7f0] sm:$0xff]
    %v935 = vld [vmem:[#allocation4 + $0x7f8] sm:$0xff]
    %v936 = vld [vmem:[%s4] sm:$0xf]
    %v938 = vlaneseq
    %v939 = vshrl.u32 %v938, 7
    %v940 = vsub.s32 0, %v939
    %v941 = vrot.slane %v936, %v940
    %v942 = vlaneseq
    %v943 = vshrl.u32 %v942, 7
    %v944 = vsub.s32 1, %v943
    %v945 = vrot.slane %v936, %v944
    %v946 = vlaneseq
    %v947 = vshrl.u32 %v946, 7
    %v948 = vsub.s32 2, %v947
    %v949 = vrot.slane %v936, %v948
    %v950 = vlaneseq
    %v951 = vshrl.u32 %v950, 7
    %v952 = vsub.s32 3, %v951
    %v953 = vrot.slane %v936, %v952
    %v1214 = vunpack.c.l.b16 %v680
    %v1215 = vunpack.c.h.b16 %v680
    %v1216 = vunpack.c.l.b16 %v681
    %v1217 = vunpack.c.h.b16 %v681
    %v1218 = vunpack.c.l.b16 %v682
    %v1219 = vunpack.c.h.b16 %v682
    %v1220 = vunpack.c.l.b16 %v683
    %v1221 = vunpack.c.h.b16 %v683
    %v1222 = vunpack.c.l.b16 %v684
    %v1223 = vunpack.c.h.b16 %v684
    %v1224 = vunpack.c.l.b16 %v685
    %v1225 = vunpack.c.h.b16 %v685
    %v1226 = vunpack.c.l.b16 %v686
    %v1227 = vunpack.c.h.b16 %v686
    %v1228 = vunpack.c.l.b16 %v687
    %v1229 = vunpack.c.h.b16 %v687
    %v1230 = vunpack.c.l.b16 %v688
    %v1231 = vunpack.c.h.b16 %v688
    %v1232 = vunpack.c.l.b16 %v689
    %v1233 = vunpack.c.h.b16 %v689
    %v1234 = vunpack.c.l.b16 %v690
    %v1235 = vunpack.c.h.b16 %v690
    %v1236 = vunpack.c.l.b16 %v691
    %v1237 = vunpack.c.h.b16 %v691
    %v1238 = vunpack.c.l.b16 %v692
    %v1239 = vunpack.c.h.b16 %v692
    %v1240 = vunpack.c.l.b16 %v693
    %v1241 = vunpack.c.h.b16 %v693
    %v1242 = vunpack.c.l.b16 %v694
    %v1243 = vunpack.c.h.b16 %v694
    %v1244 = vunpack.c.l.b16 %v695
    %v1245 = vunpack.c.h.b16 %v695
    %v1246 = vunpack.c.l.b16 %v696
    %v1247 = vunpack.c.h.b16 %v696
    %v1248 = vunpack.c.l.b16 %v697
    %v1249 = vunpack.c.h.b16 %v697
    %v1250 = vunpack.c.l.b16 %v698
    %v1251 = vunpack.c.h.b16 %v698
    %v1252 = vunpack.c.l.b16 %v699
    %v1253 = vunpack.c.h.b16 %v699
    %v1254 = vunpack.c.l.b16 %v700
    %v1255 = vunpack.c.h.b16 %v700
    %v1256 = vunpack.c.l.b16 %v701
    %v1257 = vunpack.c.h.b16 %v701
    %v1258 = vunpack.c.l.b16 %v702
    %v1259 = vunpack.c.h.b16 %v702
    %v1260 = vunpack.c.l.b16 %v703
    %v1261 = vunpack.c.h.b16 %v703
    %v1262 = vunpack.c.l.b16 %v704
    %v1263 = vunpack.c.h.b16 %v704
    %v1264 = vunpack.c.l.b16 %v705
    %v1265 = vunpack.c.h.b16 %v705
    %v1266 = vunpack.c.l.b16 %v706
    %v1267 = vunpack.c.h.b16 %v706
    %v1268 = vunpack.c.l.b16 %v707
    %v1269 = vunpack.c.h.b16 %v707
    %v1270 = vunpack.c.l.b16 %v708
    %v1271 = vunpack.c.h.b16 %v708
    %v1272 = vunpack.c.l.b16 %v709
    %v1273 = vunpack.c.h.b16 %v709
    %v1274 = vunpack.c.l.b16 %v710
    %v1275 = vunpack.c.h.b16 %v710
    %v1276 = vunpack.c.l.b16 %v711
    %v1277 = vunpack.c.h.b16 %v711
    %v1278 = vunpack.c.l.b16 %v712
    %v1279 = vunpack.c.h.b16 %v712
    %v1280 = vunpack.c.l.b16 %v713
    %v1281 = vunpack.c.h.b16 %v713
    %v1282 = vunpack.c.l.b16 %v714
    %v1283 = vunpack.c.h.b16 %v714
    %v1284 = vunpack.c.l.b16 %v715
    %v1285 = vunpack.c.h.b16 %v715
    %v1286 = vunpack.c.l.b16 %v716
    %v1287 = vunpack.c.h.b16 %v716
    %v1288 = vunpack.c.l.b16 %v717
    %v1289 = vunpack.c.h.b16 %v717
    %v1290 = vunpack.c.l.b16 %v718
    %v1291 = vunpack.c.h.b16 %v718
    %v1292 = vunpack.c.l.b16 %v719
    %v1293 = vunpack.c.h.b16 %v719
    %v1294 = vunpack.c.l.b16 %v720
    %v1295 = vunpack.c.h.b16 %v720
    %v1296 = vunpack.c.l.b16 %v721
    %v1297 = vunpack.c.h.b16 %v721
    %v1298 = vunpack.c.l.b16 %v722
    %v1299 = vunpack.c.h.b16 %v722
    %v1300 = vunpack.c.l.b16 %v723
    %v1301 = vunpack.c.h.b16 %v723
    %v1302 = vunpack.c.l.b16 %v724
    %v1303 = vunpack.c.h.b16 %v724
    %v1304 = vunpack.c.l.b16 %v725
    %v1305 = vunpack.c.h.b16 %v725
    %v1306 = vunpack.c.l.b16 %v726
    %v1307 = vunpack.c.h.b16 %v726
    %v1308 = vunpack.c.l.b16 %v727
    %v1309 = vunpack.c.h.b16 %v727
    %v1310 = vunpack.c.l.b16 %v728
    %v1311 = vunpack.c.h.b16 %v728
    %v1312 = vunpack.c.l.b16 %v729
    %v1313 = vunpack.c.h.b16 %v729
    %v1314 = vunpack.c.l.b16 %v730
    %v1315 = vunpack.c.h.b16 %v730
    %v1316 = vunpack.c.l.b16 %v731
    %v1317 = vunpack.c.h.b16 %v731
    %v1318 = vunpack.c.l.b16 %v732
    %v1319 = vunpack.c.h.b16 %v732
    %v1320 = vunpack.c.l.b16 %v733
    %v1321 = vunpack.c.h.b16 %v733
    %v1322 = vunpack.c.l.b16 %v734
    %v1323 = vunpack.c.h.b16 %v734
    %v1324 = vunpack.c.l.b16 %v735
    %v1325 = vunpack.c.h.b16 %v735
    %v1326 = vunpack.c.l.b16 %v736
    %v1327 = vunpack.c.h.b16 %v736
    %v1328 = vunpack.c.l.b16 %v737
    %v1329 = vunpack.c.h.b16 %v737
    %v1330 = vunpack.c.l.b16 %v738
    %v1331 = vunpack.c.h.b16 %v738
    %v1332 = vunpack.c.l.b16 %v739
    %v1333 = vunpack.c.h.b16 %v739
    %v1334 = vunpack.c.l.b16 %v740
    %v1335 = vunpack.c.h.b16 %v740
    %v1336 = vunpack.c.l.b16 %v741
    %v1337 = vunpack.c.h.b16 %v741
    %v1338 = vunpack.c.l.b16 %v742
    %v1339 = vunpack.c.h.b16 %v742
    %v1340 = vunpack.c.l.b16 %v743
    %v1341 = vunpack.c.h.b16 %v743
    %v1342 = vunpack.c.l.b16 %v744
    %v1343 = vunpack.c.h.b16 %v744
    %v1344 = vunpack.c.l.b16 %v745
    %v1345 = vunpack.c.h.b16 %v745
    %v1346 = vunpack.c.l.b16 %v746
    %v1347 = vunpack.c.h.b16 %v746
    %v1348 = vunpack.c.l.b16 %v747
    %v1349 = vunpack.c.h.b16 %v747
    %v1350 = vunpack.c.l.b16 %v748
    %v1351 = vunpack.c.h.b16 %v748
    %v1352 = vunpack.c.l.b16 %v749
    %v1353 = vunpack.c.h.b16 %v749
    %v1354 = vunpack.c.l.b16 %v750
    %v1355 = vunpack.c.h.b16 %v750
    %v1356 = vunpack.c.l.b16 %v751
    %v1357 = vunpack.c.h.b16 %v751
    %v1358 = vunpack.c.l.b16 %v752
    %v1359 = vunpack.c.h.b16 %v752
    %v1360 = vunpack.c.l.b16 %v753
    %v1361 = vunpack.c.h.b16 %v753
    %v1362 = vunpack.c.l.b16 %v754
    %v1363 = vunpack.c.h.b16 %v754
    %v1364 = vunpack.c.l.b16 %v755
    %v1365 = vunpack.c.h.b16 %v755
    %v1366 = vunpack.c.l.b16 %v756
    %v1367 = vunpack.c.h.b16 %v756
    %v1368 = vunpack.c.l.b16 %v757
    %v1369 = vunpack.c.h.b16 %v757
    %v1370 = vunpack.c.l.b16 %v758
    %v1371 = vunpack.c.h.b16 %v758
    %v1372 = vunpack.c.l.b16 %v759
    %v1373 = vunpack.c.h.b16 %v759
    %v1374 = vunpack.c.l.b16 %v760
    %v1375 = vunpack.c.h.b16 %v760
    %v1376 = vunpack.c.l.b16 %v761
    %v1377 = vunpack.c.h.b16 %v761
    %v1378 = vunpack.c.l.b16 %v762
    %v1379 = vunpack.c.h.b16 %v762
    %v1380 = vunpack.c.l.b16 %v763
    %v1381 = vunpack.c.h.b16 %v763
    %v1382 = vunpack.c.l.b16 %v764
    %v1383 = vunpack.c.h.b16 %v764
    %v1384 = vunpack.c.l.b16 %v765
    %v1385 = vunpack.c.h.b16 %v765
    %v1386 = vunpack.c.l.b16 %v766
    %v1387 = vunpack.c.h.b16 %v766
    %v1388 = vunpack.c.l.b16 %v767
    %v1389 = vunpack.c.h.b16 %v767
    %v1390 = vunpack.c.l.b16 %v768
    %v1391 = vunpack.c.h.b16 %v768
    %v1392 = vunpack.c.l.b16 %v769
    %v1393 = vunpack.c.h.b16 %v769
    %v1394 = vunpack.c.l.b16 %v770
    %v1395 = vunpack.c.h.b16 %v770
    %v1396 = vunpack.c.l.b16 %v771
    %v1397 = vunpack.c.h.b16 %v771
    %v1398 = vunpack.c.l.b16 %v772
    %v1399 = vunpack.c.h.b16 %v772
    %v1400 = vunpack.c.l.b16 %v773
    %v1401 = vunpack.c.h.b16 %v773
    %v1402 = vunpack.c.l.b16 %v774
    %v1403 = vunpack.c.h.b16 %v774
    %v1404 = vunpack.c.l.b16 %v775
    %v1405 = vunpack.c.h.b16 %v775
    %v1406 = vunpack.c.l.b16 %v776
    %v1407 = vunpack.c.h.b16 %v776
    %v1408 = vunpack.c.l.b16 %v777
    %v1409 = vunpack.c.h.b16 %v777
    %v1410 = vunpack.c.l.b16 %v778
    %v1411 = vunpack.c.h.b16 %v778
    %v1412 = vunpack.c.l.b16 %v779
    %v1413 = vunpack.c.h.b16 %v779
    %v1414 = vunpack.c.l.b16 %v780
    %v1415 = vunpack.c.h.b16 %v780
    %v1416 = vunpack.c.l.b16 %v781
    %v1417 = vunpack.c.h.b16 %v781
    %v1418 = vunpack.c.l.b16 %v782
    %v1419 = vunpack.c.h.b16 %v782
    %v1420 = vunpack.c.l.b16 %v783
    %v1421 = vunpack.c.h.b16 %v783
    %v1422 = vunpack.c.l.b16 %v784
    %v1423 = vunpack.c.h.b16 %v784
    %v1424 = vunpack.c.l.b16 %v785
    %v1425 = vunpack.c.h.b16 %v785
    %v1426 = vunpack.c.l.b16 %v786
    %v1427 = vunpack.c.h.b16 %v786
    %v1428 = vunpack.c.l.b16 %v787
    %v1429 = vunpack.c.h.b16 %v787
    %v1430 = vunpack.c.l.b16 %v788
    %v1431 = vunpack.c.h.b16 %v788
    %v1432 = vunpack.c.l.b16 %v789
    %v1433 = vunpack.c.h.b16 %v789
    %v1434 = vunpack.c.l.b16 %v790
    %v1435 = vunpack.c.h.b16 %v790
    %v1436 = vunpack.c.l.b16 %v791
    %v1437 = vunpack.c.h.b16 %v791
    %v1438 = vunpack.c.l.b16 %v792
    %v1439 = vunpack.c.h.b16 %v792
    %v1440 = vunpack.c.l.b16 %v793
    %v1441 = vunpack.c.h.b16 %v793
    %v1442 = vunpack.c.l.b16 %v794
    %v1443 = vunpack.c.h.b16 %v794
    %v1444 = vunpack.c.l.b16 %v795
    %v1445 = vunpack.c.h.b16 %v795
    %v1446 = vunpack.c.l.b16 %v796
    %v1447 = vunpack.c.h.b16 %v796
    %v1448 = vunpack.c.l.b16 %v797
    %v1449 = vunpack.c.h.b16 %v797
    %v1450 = vunpack.c.l.b16 %v798
    %v1451 = vunpack.c.h.b16 %v798
    %v1452 = vunpack.c.l.b16 %v799
    %v1453 = vunpack.c.h.b16 %v799
    %v1454 = vunpack.c.l.b16 %v800
    %v1455 = vunpack.c.h.b16 %v800
    %v1456 = vunpack.c.l.b16 %v801
    %v1457 = vunpack.c.h.b16 %v801
    %v1458 = vunpack.c.l.b16 %v802
    %v1459 = vunpack.c.h.b16 %v802
    %v1460 = vunpack.c.l.b16 %v803
    %v1461 = vunpack.c.h.b16 %v803
    %v1462 = vunpack.c.l.b16 %v804
    %v1463 = vunpack.c.h.b16 %v804
    %v1464 = vunpack.c.l.b16 %v805
    %v1465 = vunpack.c.h.b16 %v805
    %v1466 = vunpack.c.l.b16 %v806
    %v1467 = vunpack.c.h.b16 %v806
    %v1468 = vunpack.c.l.b16 %v807
    %v1469 = vunpack.c.h.b16 %v807
    %v1470 = vunpack.c.l.b16 %v808
    %v1471 = vunpack.c.h.b16 %v808
    %v1472 = vunpack.c.l.b16 %v809
    %v1473 = vunpack.c.h.b16 %v809
    %v1474 = vunpack.c.l.b16 %v810
    %v1475 = vunpack.c.h.b16 %v810
    %v1476 = vunpack.c.l.b16 %v811
    %v1477 = vunpack.c.h.b16 %v811
    %v1478 = vunpack.c.l.b16 %v812
    %v1479 = vunpack.c.h.b16 %v812
    %v1480 = vunpack.c.l.b16 %v813
    %v1481 = vunpack.c.h.b16 %v813
    %v1482 = vunpack.c.l.b16 %v814
    %v1483 = vunpack.c.h.b16 %v814
    %v1484 = vunpack.c.l.b16 %v815
    %v1485 = vunpack.c.h.b16 %v815
    %v1486 = vunpack.c.l.b16 %v816
    %v1487 = vunpack.c.h.b16 %v816
    %v1488 = vunpack.c.l.b16 %v817
    %v1489 = vunpack.c.h.b16 %v817
    %v1490 = vunpack.c.l.b16 %v818
    %v1491 = vunpack.c.h.b16 %v818
    %v1492 = vunpack.c.l.b16 %v819
    %v1493 = vunpack.c.h.b16 %v819
    %v1494 = vunpack.c.l.b16 %v820
    %v1495 = vunpack.c.h.b16 %v820
    %v1496 = vunpack.c.l.b16 %v821
    %v1497 = vunpack.c.h.b16 %v821
    %v1498 = vunpack.c.l.b16 %v822
    %v1499 = vunpack.c.h.b16 %v822
    %v1500 = vunpack.c.l.b16 %v823
    %v1501 = vunpack.c.h.b16 %v823
    %v1502 = vunpack.c.l.b16 %v824
    %v1503 = vunpack.c.h.b16 %v824
    %v1504 = vunpack.c.l.b16 %v825
    %v1505 = vunpack.c.h.b16 %v825
    %v1506 = vunpack.c.l.b16 %v826
    %v1507 = vunpack.c.h.b16 %v826
    %v1508 = vunpack.c.l.b16 %v827
    %v1509 = vunpack.c.h.b16 %v827
    %v1510 = vunpack.c.l.b16 %v828
    %v1511 = vunpack.c.h.b16 %v828
    %v1512 = vunpack.c.l.b16 %v829
    %v1513 = vunpack.c.h.b16 %v829
    %v1514 = vunpack.c.l.b16 %v830
    %v1515 = vunpack.c.h.b16 %v830
    %v1516 = vunpack.c.l.b16 %v831
    %v1517 = vunpack.c.h.b16 %v831
    %v1518 = vunpack.c.l.b16 %v832
    %v1519 = vunpack.c.h.b16 %v832
    %v1520 = vunpack.c.l.b16 %v833
    %v1521 = vunpack.c.h.b16 %v833
    %v1522 = vunpack.c.l.b16 %v834
    %v1523 = vunpack.c.h.b16 %v834
    %v1524 = vunpack.c.l.b16 %v835
    %v1525 = vunpack.c.h.b16 %v835
    %v1526 = vunpack.c.l.b16 %v836
    %v1527 = vunpack.c.h.b16 %v836
    %v1528 = vunpack.c.l.b16 %v837
    %v1529 = vunpack.c.h.b16 %v837
    %v1530 = vunpack.c.l.b16 %v838
    %v1531 = vunpack.c.h.b16 %v838
    %v1532 = vunpack.c.l.b16 %v839
    %v1533 = vunpack.c.h.b16 %v839
    %v1534 = vunpack.c.l.b16 %v840
    %v1535 = vunpack.c.h.b16 %v840
    %v1536 = vunpack.c.l.b16 %v841
    %v1537 = vunpack.c.h.b16 %v841
    %v1538 = vunpack.c.l.b16 %v842
    %v1539 = vunpack.c.h.b16 %v842
    %v1540 = vunpack.c.l.b16 %v843
    %v1541 = vunpack.c.h.b16 %v843
    %v1542 = vunpack.c.l.b16 %v844
    %v1543 = vunpack.c.h.b16 %v844
    %v1544 = vunpack.c.l.b16 %v845
    %v1545 = vunpack.c.h.b16 %v845
    %v1546 = vunpack.c.l.b16 %v846
    %v1547 = vunpack.c.h.b16 %v846
    %v1548 = vunpack.c.l.b16 %v847
    %v1549 = vunpack.c.h.b16 %v847
    %v1550 = vunpack.c.l.b16 %v848
    %v1551 = vunpack.c.h.b16 %v848
    %v1552 = vunpack.c.l.b16 %v849
    %v1553 = vunpack.c.h.b16 %v849
    %v1554 = vunpack.c.l.b16 %v850
    %v1555 = vunpack.c.h.b16 %v850
    %v1556 = vunpack.c.l.b16 %v851
    %v1557 = vunpack.c.h.b16 %v851
    %v1558 = vunpack.c.l.b16 %v852
    %v1559 = vunpack.c.h.b16 %v852
    %v1560 = vunpack.c.l.b16 %v853
    %v1561 = vunpack.c.h.b16 %v853
    %v1562 = vunpack.c.l.b16 %v854
    %v1563 = vunpack.c.h.b16 %v854
    %v1564 = vunpack.c.l.b16 %v855
    %v1565 = vunpack.c.h.b16 %v855
    %v1566 = vunpack.c.l.b16 %v856
    %v1567 = vunpack.c.h.b16 %v856
    %v1568 = vunpack.c.l.b16 %v857
    %v1569 = vunpack.c.h.b16 %v857
    %v1570 = vunpack.c.l.b16 %v858
    %v1571 = vunpack.c.h.b16 %v858
    %v1572 = vunpack.c.l.b16 %v859
    %v1573 = vunpack.c.h.b16 %v859
    %v1574 = vunpack.c.l.b16 %v860
    %v1575 = vunpack.c.h.b16 %v860
    %v1576 = vunpack.c.l.b16 %v861
    %v1577 = vunpack.c.h.b16 %v861
    %v1578 = vunpack.c.l.b16 %v862
    %v1579 = vunpack.c.h.b16 %v862
    %v1580 = vunpack.c.l.b16 %v863
    %v1581 = vunpack.c.h.b16 %v863
    %v1582 = vunpack.c.l.b16 %v864
    %v1583 = vunpack.c.h.b16 %v864
    %v1584 = vunpack.c.l.b16 %v865
    %v1585 = vunpack.c.h.b16 %v865
    %v1586 = vunpack.c.l.b16 %v866
    %v1587 = vunpack.c.h.b16 %v866
    %v1588 = vunpack.c.l.b16 %v867
    %v1589 = vunpack.c.h.b16 %v867
    %v1590 = vunpack.c.l.b16 %v868
    %v1591 = vunpack.c.h.b16 %v868
    %v1592 = vunpack.c.l.b16 %v869
    %v1593 = vunpack.c.h.b16 %v869
    %v1594 = vunpack.c.l.b16 %v870
    %v1595 = vunpack.c.h.b16 %v870
    %v1596 = vunpack.c.l.b16 %v871
    %v1597 = vunpack.c.h.b16 %v871
    %v1598 = vunpack.c.l.b16 %v872
    %v1599 = vunpack.c.h.b16 %v872
    %v1600 = vunpack.c.l.b16 %v873
    %v1601 = vunpack.c.h.b16 %v873
    %v1602 = vunpack.c.l.b16 %v874
    %v1603 = vunpack.c.h.b16 %v874
    %v1604 = vunpack.c.l.b16 %v875
    %v1605 = vunpack.c.h.b16 %v875
    %v1606 = vunpack.c.l.b16 %v876
    %v1607 = vunpack.c.h.b16 %v876
    %v1608 = vunpack.c.l.b16 %v877
    %v1609 = vunpack.c.h.b16 %v877
    %v1610 = vunpack.c.l.b16 %v878
    %v1611 = vunpack.c.h.b16 %v878
    %v1612 = vunpack.c.l.b16 %v879
    %v1613 = vunpack.c.h.b16 %v879
    %v1614 = vunpack.c.l.b16 %v880
    %v1615 = vunpack.c.h.b16 %v880
    %v1616 = vunpack.c.l.b16 %v881
    %v1617 = vunpack.c.h.b16 %v881
    %v1618 = vunpack.c.l.b16 %v882
    %v1619 = vunpack.c.h.b16 %v882
    %v1620 = vunpack.c.l.b16 %v883
    %v1621 = vunpack.c.h.b16 %v883
    %v1622 = vunpack.c.l.b16 %v884
    %v1623 = vunpack.c.h.b16 %v884
    %v1624 = vunpack.c.l.b16 %v885
    %v1625 = vunpack.c.h.b16 %v885
    %v1626 = vunpack.c.l.b16 %v886
    %v1627 = vunpack.c.h.b16 %v886
    %v1628 = vunpack.c.l.b16 %v887
    %v1629 = vunpack.c.h.b16 %v887
    %v1630 = vunpack.c.l.b16 %v888
    %v1631 = vunpack.c.h.b16 %v888
    %v1632 = vunpack.c.l.b16 %v889
    %v1633 = vunpack.c.h.b16 %v889
    %v1634 = vunpack.c.l.b16 %v890
    %v1635 = vunpack.c.h.b16 %v890
    %v1636 = vunpack.c.l.b16 %v891
    %v1637 = vunpack.c.h.b16 %v891
    %v1638 = vunpack.c.l.b16 %v892
    %v1639 = vunpack.c.h.b16 %v892
    %v1640 = vunpack.c.l.b16 %v893
    %v1641 = vunpack.c.h.b16 %v893
    %v1642 = vunpack.c.l.b16 %v894
    %v1643 = vunpack.c.h.b16 %v894
    %v1644 = vunpack.c.l.b16 %v895
    %v1645 = vunpack.c.h.b16 %v895
    %v1646 = vunpack.c.l.b16 %v896
    %v1647 = vunpack.c.h.b16 %v896
    %v1648 = vunpack.c.l.b16 %v897
    %v1649 = vunpack.c.h.b16 %v897
    %v1650 = vunpack.c.l.b16 %v898
    %v1651 = vunpack.c.h.b16 %v898
    %v1652 = vunpack.c.l.b16 %v899
    %v1653 = vunpack.c.h.b16 %v899
    %v1654 = vunpack.c.l.b16 %v900
    %v1655 = vunpack.c.h.b16 %v900
    %v1656 = vunpack.c.l.b16 %v901
    %v1657 = vunpack.c.h.b16 %v901
    %v1658 = vunpack.c.l.b16 %v902
    %v1659 = vunpack.c.h.b16 %v902
    %v1660 = vunpack.c.l.b16 %v903
    %v1661 = vunpack.c.h.b16 %v903
    %v1662 = vunpack.c.l.b16 %v904
    %v1663 = vunpack.c.h.b16 %v904
    %v1664 = vunpack.c.l.b16 %v905
    %v1665 = vunpack.c.h.b16 %v905
    %v1666 = vunpack.c.l.b16 %v906
    %v1667 = vunpack.c.h.b16 %v906
    %v1668 = vunpack.c.l.b16 %v907
    %v1669 = vunpack.c.h.b16 %v907
    %v1670 = vunpack.c.l.b16 %v908
    %v1671 = vunpack.c.h.b16 %v908
    %v1672 = vunpack.c.l.b16 %v909
    %v1673 = vunpack.c.h.b16 %v909
    %v1674 = vunpack.c.l.b16 %v910
    %v1675 = vunpack.c.h.b16 %v910
    %v1676 = vunpack.c.l.b16 %v911
    %v1677 = vunpack.c.h.b16 %v911
    %v1678 = vunpack.c.l.b16 %v912
    %v1679 = vunpack.c.h.b16 %v912
    %v1680 = vunpack.c.l.b16 %v913
    %v1681 = vunpack.c.h.b16 %v913
    %v1682 = vunpack.c.l.b16 %v914
    %v1683 = vunpack.c.h.b16 %v914
    %v1684 = vunpack.c.l.b16 %v915
    %v1685 = vunpack.c.h.b16 %v915
    %v1686 = vunpack.c.l.b16 %v916
    %v1687 = vunpack.c.h.b16 %v916
    %v1688 = vunpack.c.l.b16 %v917
    %v1689 = vunpack.c.h.b16 %v917
    %v1690 = vunpack.c.l.b16 %v918
    %v1691 = vunpack.c.h.b16 %v918
    %v1692 = vunpack.c.l.b16 %v919
    %v1693 = vunpack.c.h.b16 %v919
    %v1694 = vunpack.c.l.b16 %v920
    %v1695 = vunpack.c.h.b16 %v920
    %v1696 = vunpack.c.l.b16 %v921
    %v1697 = vunpack.c.h.b16 %v921
    %v1698 = vunpack.c.l.b16 %v922
    %v1699 = vunpack.c.h.b16 %v922
    %v1700 = vunpack.c.l.b16 %v923
    %v1701 = vunpack.c.h.b16 %v923
    %v1702 = vunpack.c.l.b16 %v924
    %v1703 = vunpack.c.h.b16 %v924
    %v1704 = vunpack.c.l.b16 %v925
    %v1705 = vunpack.c.h.b16 %v925
    %v1706 = vunpack.c.l.b16 %v926
    %v1707 = vunpack.c.h.b16 %v926
    %v1708 = vunpack.c.l.b16 %v927
    %v1709 = vunpack.c.h.b16 %v927
    %v1710 = vunpack.c.l.b16 %v928
    %v1711 = vunpack.c.h.b16 %v928
    %v1712 = vunpack.c.l.b16 %v929
    %v1713 = vunpack.c.h.b16 %v929
    %v1714 = vunpack.c.l.b16 %v930
    %v1715 = vunpack.c.h.b16 %v930
    %v1716 = vunpack.c.l.b16 %v931
    %v1717 = vunpack.c.h.b16 %v931
    %v1718 = vunpack.c.l.b16 %v932
    %v1719 = vunpack.c.h.b16 %v932
    %v1720 = vunpack.c.l.b16 %v933
    %v1721 = vunpack.c.h.b16 %v933
    %v1722 = vunpack.c.l.b16 %v934
    %v1723 = vunpack.c.h.b16 %v934
    %v1724 = vunpack.c.l.b16 %v935
    %v1725 = vunpack.c.h.b16 %v935
    %v1726 = vpack.c.b16 %v1218, %v1214
    %v1727 = vpack.c.b16 %v1219, %v1215
    %v1728 = vpack.c.b16 %v1220, %v1216
    %v1729 = vpack.c.b16 %v1221, %v1217
    %v1730 = vpack.c.b16 %v1226, %v1222
    %v1731 = vpack.c.b16 %v1227, %v1223
    %v1732 = vpack.c.b16 %v1228, %v1224
    %v1733 = vpack.c.b16 %v1229, %v1225
    %v1734 = vpack.c.b16 %v1234, %v1230
    %v1735 = vpack.c.b16 %v1235, %v1231
    %v1736 = vpack.c.b16 %v1236, %v1232
    %v1737 = vpack.c.b16 %v1237, %v1233
    %v1738 = vpack.c.b16 %v1242, %v1238
    %v1739 = vpack.c.b16 %v1243, %v1239
    %v1740 = vpack.c.b16 %v1244, %v1240
    %v1741 = vpack.c.b16 %v1245, %v1241
    %v1742 = vpack.c.b16 %v1250, %v1246
    %v1743 = vpack.c.b16 %v1251, %v1247
    %v1744 = vpack.c.b16 %v1252, %v1248
    %v1745 = vpack.c.b16 %v1253, %v1249
    %v1746 = vpack.c.b16 %v1258, %v1254
    %v1747 = vpack.c.b16 %v1259, %v1255
    %v1748 = vpack.c.b16 %v1260, %v1256
    %v1749 = vpack.c.b16 %v1261, %v1257
    %v1750 = vpack.c.b16 %v1266, %v1262
    %v1751 = vpack.c.b16 %v1267, %v1263
    %v1752 = vpack.c.b16 %v1268, %v1264
    %v1753 = vpack.c.b16 %v1269, %v1265
    %v1754 = vpack.c.b16 %v1274, %v1270
    %v1755 = vpack.c.b16 %v1275, %v1271
    %v1756 = vpack.c.b16 %v1276, %v1272
    %v1757 = vpack.c.b16 %v1277, %v1273
    %v1758 = vpack.c.b16 %v1282, %v1278
    %v1759 = vpack.c.b16 %v1283, %v1279
    %v1760 = vpack.c.b16 %v1284, %v1280
    %v1761 = vpack.c.b16 %v1285, %v1281
    %v1762 = vpack.c.b16 %v1290, %v1286
    %v1763 = vpack.c.b16 %v1291, %v1287
    %v1764 = vpack.c.b16 %v1292, %v1288
    %v1765 = vpack.c.b16 %v1293, %v1289
    %v1766 = vpack.c.b16 %v1298, %v1294
    %v1767 = vpack.c.b16 %v1299, %v1295
    %v1768 = vpack.c.b16 %v1300, %v1296
    %v1769 = vpack.c.b16 %v1301, %v1297
    %v1770 = vpack.c.b16 %v1306, %v1302
    %v1771 = vpack.c.b16 %v1307, %v1303
    %v1772 = vpack.c.b16 %v1308, %v1304
    %v1773 = vpack.c.b16 %v1309, %v1305
    %v1774 = vpack.c.b16 %v1314, %v1310
    %v1775 = vpack.c.b16 %v1315, %v1311
    %v1776 = vpack.c.b16 %v1316, %v1312
    %v1777 = vpack.c.b16 %v1317, %v1313
    %v1778 = vpack.c.b16 %v1322, %v1318
    %v1779 = vpack.c.b16 %v1323, %v1319
    %v1780 = vpack.c.b16 %v1324, %v1320
    %v1781 = vpack.c.b16 %v1325, %v1321
    %v1782 = vpack.c.b16 %v1330, %v1326
    %v1783 = vpack.c.b16 %v1331, %v1327
    %v1784 = vpack.c.b16 %v1332, %v1328
    %v1785 = vpack.c.b16 %v1333, %v1329
    %v1786 = vpack.c.b16 %v1338, %v1334
    %v1787 = vpack.c.b16 %v1339, %v1335
    %v1788 = vpack.c.b16 %v1340, %v1336
    %v1789 = vpack.c.b16 %v1341, %v1337
    %v1790 = vpack.c.b16 %v1346, %v1342
    %v1791 = vpack.c.b16 %v1347, %v1343
    %v1792 = vpack.c.b16 %v1348, %v1344
    %v1793 = vpack.c.b16 %v1349, %v1345
    %v1794 = vpack.c.b16 %v1354, %v1350
    %v1795 = vpack.c.b16 %v1355, %v1351
    %v1796 = vpack.c.b16 %v1356, %v1352
    %v1797 = vpack.c.b16 %v1357, %v1353
    %v1798 = vpack.c.b16 %v1362, %v1358
    %v1799 = vpack.c.b16 %v1363, %v1359
    %v1800 = vpack.c.b16 %v1364, %v1360
    %v1801 = vpack.c.b16 %v1365, %v1361
    %v1802 = vpack.c.b16 %v1370, %v1366
    %v1803 = vpack.c.b16 %v1371, %v1367
    %v1804 = vpack.c.b16 %v1372, %v1368
    %v1805 = vpack.c.b16 %v1373, %v1369
    %v1806 = vpack.c.b16 %v1378, %v1374
    %v1807 = vpack.c.b16 %v1379, %v1375
    %v1808 = vpack.c.b16 %v1380, %v1376
    %v1809 = vpack.c.b16 %v1381, %v1377
    %v1810 = vpack.c.b16 %v1386, %v1382
    %v1811 = vpack.c.b16 %v1387, %v1383
    %v1812 = vpack.c.b16 %v1388, %v1384
    %v1813 = vpack.c.b16 %v1389, %v1385
    %v1814 = vpack.c.b16 %v1394, %v1390
    %v1815 = vpack.c.b16 %v1395, %v1391
    %v1816 = vpack.c.b16 %v1396, %v1392
    %v1817 = vpack.c.b16 %v1397, %v1393
    %v1818 = vpack.c.b16 %v1402, %v1398
    %v1819 = vpack.c.b16 %v1403, %v1399
    %v1820 = vpack.c.b16 %v1404, %v1400
    %v1821 = vpack.c.b16 %v1405, %v1401
    %v1822 = vpack.c.b16 %v1410, %v1406
    %v1823 = vpack.c.b16 %v1411, %v1407
    %v1824 = vpack.c.b16 %v1412, %v1408
    %v1825 = vpack.c.b16 %v1413, %v1409
    %v1826 = vpack.c.b16 %v1418, %v1414
    %v1827 = vpack.c.b16 %v1419, %v1415
    %v1828 = vpack.c.b16 %v1420, %v1416
    %v1829 = vpack.c.b16 %v1421, %v1417
    %v1830 = vpack.c.b16 %v1426, %v1422
    %v1831 = vpack.c.b16 %v1427, %v1423
    %v1832 = vpack.c.b16 %v1428, %v1424
    %v1833 = vpack.c.b16 %v1429, %v1425
    %v1834 = vpack.c.b16 %v1434, %v1430
    %v1835 = vpack.c.b16 %v1435, %v1431
    %v1836 = vpack.c.b16 %v1436, %v1432
    %v1837 = vpack.c.b16 %v1437, %v1433
    %v1838 = vpack.c.b16 %v1442, %v1438
    %v1839 = vpack.c.b16 %v1443, %v1439
    %v1840 = vpack.c.b16 %v1444, %v1440
    %v1841 = vpack.c.b16 %v1445, %v1441
    %v1842 = vpack.c.b16 %v1450, %v1446
    %v1843 = vpack.c.b16 %v1451, %v1447
    %v1844 = vpack.c.b16 %v1452, %v1448
    %v1845 = vpack.c.b16 %v1453, %v1449
    %v1846 = vpack.c.b16 %v1458, %v1454
    %v1847 = vpack.c.b16 %v1459, %v1455
    %v1848 = vpack.c.b16 %v1460, %v1456
    %v1849 = vpack.c.b16 %v1461, %v1457
    %v1850 = vpack.c.b16 %v1466, %v1462
    %v1851 = vpack.c.b16 %v1467, %v1463
    %v1852 = vpack.c.b16 %v1468, %v1464
    %v1853 = vpack.c.b16 %v1469, %v1465
    %v1854 = vpack.c.b16 %v1474, %v1470
    %v1855 = vpack.c.b16 %v1475, %v1471
    %v1856 = vpack.c.b16 %v1476, %v1472
    %v1857 = vpack.c.b16 %v1477, %v1473
    %v1858 = vpack.c.b16 %v1482, %v1478
    %v1859 = vpack.c.b16 %v1483, %v1479
    %v1860 = vpack.c.b16 %v1484, %v1480
    %v1861 = vpack.c.b16 %v1485, %v1481
    %v1862 = vpack.c.b16 %v1490, %v1486
    %v1863 = vpack.c.b16 %v1491, %v1487
    %v1864 = vpack.c.b16 %v1492, %v1488
    %v1865 = vpack.c.b16 %v1493, %v1489
    %v1866 = vpack.c.b16 %v1498, %v1494
    %v1867 = vpack.c.b16 %v1499, %v1495
    %v1868 = vpack.c.b16 %v1500, %v1496
    %v1869 = vpack.c.b16 %v1501, %v1497
    %v1870 = vpack.c.b16 %v1506, %v1502
    %v1871 = vpack.c.b16 %v1507, %v1503
    %v1872 = vpack.c.b16 %v1508, %v1504
    %v1873 = vpack.c.b16 %v1509, %v1505
    %v1874 = vpack.c.b16 %v1514, %v1510
    %v1875 = vpack.c.b16 %v1515, %v1511
    %v1876 = vpack.c.b16 %v1516, %v1512
    %v1877 = vpack.c.b16 %v1517, %v1513
    %v1878 = vpack.c.b16 %v1522, %v1518
    %v1879 = vpack.c.b16 %v1523, %v1519
    %v1880 = vpack.c.b16 %v1524, %v1520
    %v1881 = vpack.c.b16 %v1525, %v1521
    %v1882 = vpack.c.b16 %v1530, %v1526
    %v1883 = vpack.c.b16 %v1531, %v1527
    %v1884 = vpack.c.b16 %v1532, %v1528
    %v1885 = vpack.c.b16 %v1533, %v1529
    %v1886 = vpack.c.b16 %v1538, %v1534
    %v1887 = vpack.c.b16 %v1539, %v1535
    %v1888 = vpack.c.b16 %v1540, %v1536
    %v1889 = vpack.c.b16 %v1541, %v1537
    %v1890 = vpack.c.b16 %v1546, %v1542
    %v1891 = vpack.c.b16 %v1547, %v1543
    %v1892 = vpack.c.b16 %v1548, %v1544
    %v1893 = vpack.c.b16 %v1549, %v1545
    %v1894 = vpack.c.b16 %v1554, %v1550
    %v1895 = vpack.c.b16 %v1555, %v1551
    %v1896 = vpack.c.b16 %v1556, %v1552
    %v1897 = vpack.c.b16 %v1557, %v1553
    %v1898 = vpack.c.b16 %v1562, %v1558
    %v1899 = vpack.c.b16 %v1563, %v1559
    %v1900 = vpack.c.b16 %v1564, %v1560
    %v1901 = vpack.c.b16 %v1565, %v1561
    %v1902 = vpack.c.b16 %v1570, %v1566
    %v1903 = vpack.c.b16 %v1571, %v1567
    %v1904 = vpack.c.b16 %v1572, %v1568
    %v1905 = vpack.c.b16 %v1573, %v1569
    %v1906 = vpack.c.b16 %v1578, %v1574
    %v1907 = vpack.c.b16 %v1579, %v1575
    %v1908 = vpack.c.b16 %v1580, %v1576
    %v1909 = vpack.c.b16 %v1581, %v1577
    %v1910 = vpack.c.b16 %v1586, %v1582
    %v1911 = vpack.c.b16 %v1587, %v1583
    %v1912 = vpack.c.b16 %v1588, %v1584
    %v1913 = vpack.c.b16 %v1589, %v1585
    %v1914 = vpack.c.b16 %v1594, %v1590
    %v1915 = vpack.c.b16 %v1595, %v1591
    %v1916 = vpack.c.b16 %v1596, %v1592
    %v1917 = vpack.c.b16 %v1597, %v1593
    %v1918 = vpack.c.b16 %v1602, %v1598
    %v1919 = vpack.c.b16 %v1603, %v1599
    %v1920 = vpack.c.b16 %v1604, %v1600
    %v1921 = vpack.c.b16 %v1605, %v1601
    %v1922 = vpack.c.b16 %v1610, %v1606
    %v1923 = vpack.c.b16 %v1611, %v1607
    %v1924 = vpack.c.b16 %v1612, %v1608
    %v1925 = vpack.c.b16 %v1613, %v1609
    %v1926 = vpack.c.b16 %v1618, %v1614
    %v1927 = vpack.c.b16 %v1619, %v1615
    %v1928 = vpack.c.b16 %v1620, %v1616
    %v1929 = vpack.c.b16 %v1621, %v1617
    %v1930 = vpack.c.b16 %v1626, %v1622
    %v1931 = vpack.c.b16 %v1627, %v1623
    %v1932 = vpack.c.b16 %v1628, %v1624
    %v1933 = vpack.c.b16 %v1629, %v1625
    %v1934 = vpack.c.b16 %v1634, %v1630
    %v1935 = vpack.c.b16 %v1635, %v1631
    %v1936 = vpack.c.b16 %v1636, %v1632
    %v1937 = vpack.c.b16 %v1637, %v1633
    %v1938 = vpack.c.b16 %v1642, %v1638
    %v1939 = vpack.c.b16 %v1643, %v1639
    %v1940 = vpack.c.b16 %v1644, %v1640
    %v1941 = vpack.c.b16 %v1645, %v1641
    %v1942 = vpack.c.b16 %v1650, %v1646
    %v1943 = vpack.c.b16 %v1651, %v1647
    %v1944 = vpack.c.b16 %v1652, %v1648
    %v1945 = vpack.c.b16 %v1653, %v1649
    %v1946 = vpack.c.b16 %v1658, %v1654
    %v1947 = vpack.c.b16 %v1659, %v1655
    %v1948 = vpack.c.b16 %v1660, %v1656
    %v1949 = vpack.c.b16 %v1661, %v1657
    %v1950 = vpack.c.b16 %v1666, %v1662
    %v1951 = vpack.c.b16 %v1667, %v1663
    %v1952 = vpack.c.b16 %v1668, %v1664
    %v1953 = vpack.c.b16 %v1669, %v1665
    %v1954 = vpack.c.b16 %v1674, %v1670
    %v1955 = vpack.c.b16 %v1675, %v1671
    %v1956 = vpack.c.b16 %v1676, %v1672
    %v1957 = vpack.c.b16 %v1677, %v1673
    %v1958 = vpack.c.b16 %v1682, %v1678
    %v1959 = vpack.c.b16 %v1683, %v1679
    %v1960 = vpack.c.b16 %v1684, %v1680
    %v1961 = vpack.c.b16 %v1685, %v1681
    %v1962 = vpack.c.b16 %v1690, %v1686
    %v1963 = vpack.c.b16 %v1691, %v1687
    %v1964 = vpack.c.b16 %v1692, %v1688
    %v1965 = vpack.c.b16 %v1693, %v1689
    %v1966 = vpack.c.b16 %v1698, %v1694
    %v1967 = vpack.c.b16 %v1699, %v1695
    %v1968 = vpack.c.b16 %v1700, %v1696
    %v1969 = vpack.c.b16 %v1701, %v1697
    %v1970 = vpack.c.b16 %v1706, %v1702
    %v1971 = vpack.c.b16 %v1707, %v1703
    %v1972 = vpack.c.b16 %v1708, %v1704
    %v1973 = vpack.c.b16 %v1709, %v1705
    %v1974 = vpack.c.b16 %v1714, %v1710
    %v1975 = vpack.c.b16 %v1715, %v1711
    %v1976 = vpack.c.b16 %v1716, %v1712
    %v1977 = vpack.c.b16 %v1717, %v1713
    %v1978 = vpack.c.b16 %v1722, %v1718
    %v1979 = vpack.c.b16 %v1723, %v1719
    %v1980 = vpack.c.b16 %v1724, %v1720
    %v1981 = vpack.c.b16 %v1725, %v1721
    %2238 = vmatprep.subr.bf16.mxu0 %v1727
    %2239 = vmatpush1.bf16.msra.mxu0 %v1726
    %2240 = vmatprep.subr.bf16.mxu0 %v1731
    %2241 = vmatpush1.bf16.msra.mxu0 %v1730
    %2242 = vmatprep.subr.bf16.mxu0 %v1735
    %2243 = vmatpush1.bf16.msra.mxu0 %v1734
    %2244 = vmatprep.subr.bf16.mxu0 %v1739
    %2245 = vmatpush1.bf16.msra.mxu0 %v1738
    %2246 = vmatprep.subr.bf16.mxu0 %v1743
    %2247 = vmatpush1.bf16.msra.mxu0 %v1742
    %2248 = vmatprep.subr.bf16.mxu0 %v1747
    %2249 = vmatpush1.bf16.msra.mxu0 %v1746
    %2250 = vmatprep.subr.bf16.mxu0 %v1751
    %2251 = vmatpush1.bf16.msra.mxu0 %v1750
    %2252 = vmatprep.subr.bf16.mxu0 %v1755
    %2253 = vmatpush1.bf16.msra.mxu0 %v1754
    %2254 = vmatprep.subr.bf16.mxu0 %v1759
    %2255 = vmatpush1.bf16.msra.mxu0 %v1758
    %2256 = vmatprep.subr.bf16.mxu0 %v1763
    %2257 = vmatpush1.bf16.msra.mxu0 %v1762
    %2258 = vmatprep.subr.bf16.mxu0 %v1767
    %2259 = vmatpush1.bf16.msra.mxu0 %v1766
    %2260 = vmatprep.subr.bf16.mxu0 %v1771
    %2261 = vmatpush1.bf16.msra.mxu0 %v1770
    %2262 = vmatprep.subr.bf16.mxu0 %v1775
    %2263 = vmatpush1.bf16.msra.mxu0 %v1774
    %2264 = vmatprep.subr.bf16.mxu0 %v1779
    %2265 = vmatpush1.bf16.msra.mxu0 %v1778
    %2266 = vmatprep.subr.bf16.mxu0 %v1783
    %2267 = vmatpush1.bf16.msra.mxu0 %v1782
    %2268 = vmatprep.subr.bf16.mxu0 %v1787
    %2269 = vmatpush1.bf16.msra.mxu0 %v1786
    %2270 = vmatprep.mubr.bf16.mxu0 %v673
    %2271 = vmatmul.mubr.bf16.gmra.mrb[0].mxu0 %v672
    %v2272 = vpop.f32.mrb[0].mxu0
    %v2273 = vadd.f32 %v941, %v2272
    %v2274 = vpop.f32.mrb[0].mxu0
    %v2275 = vadd.f32 %v945, %v2274
    %v2276 = vpop.f32.mrb[0].mxu0
    %v2277 = vpop.f32.mrb[0].mxu0
    %2278 = vdwg.mxu0
    %2279 = vmatprep.subr.bf16.mxu0 %v1791
    %2280 = vmatpush1.bf16.msra.mxu0 %v1790
    %2281 = vmatprep.subr.bf16.mxu0 %v1795
    %2282 = vmatpush1.bf16.msra.mxu0 %v1794
    %2283 = vmatprep.subr.bf16.mxu0 %v1799
    %2284 = vmatpush1.bf16.msra.mxu0 %v1798
    %2285 = vmatprep.subr.bf16.mxu0 %v1803
    %2286 = vmatpush1.bf16.msra.mxu0 %v1802
    %2287 = vmatprep.subr.bf16.mxu0 %v1807
    %2288 = vmatpush1.bf16.msra.mxu0 %v1806
    %2289 = vmatprep.subr.bf16.mxu0 %v1811
    %2290 = vmatpush1.bf16.msra.mxu0 %v1810
    %2291 = vmatprep.subr.bf16.mxu0 %v1815
    %2292 = vmatpush1.bf16.msra.mxu0 %v1814
    %2293 = vmatprep.subr.bf16.mxu0 %v1819
    %2294 = vmatpush1.bf16.msra.mxu0 %v1818
    %2295 = vmatprep.subr.bf16.mxu0 %v1823
    %2296 = vmatpush1.bf16.msra.mxu0 %v1822
    %2297 = vmatprep.subr.bf16.mxu0 %v1827
    %2298 = vmatpush1.bf16.msra.mxu0 %v1826
    %2299 = vmatprep.subr.bf16.mxu0 %v1831
    %2300 = vmatpush1.bf16.msra.mxu0 %v1830
    %2301 = vmatprep.subr.bf16.mxu0 %v1835
    %2302 = vmatpush1.bf16.msra.mxu0 %v1834
    %2303 = vmatprep.subr.bf16.mxu0 %v1839
    %2304 = vmatpush1.bf16.msra.mxu0 %v1838
    %2305 = vmatprep.subr.bf16.mxu0 %v1843
    %2306 = vmatpush1.bf16.msra.mxu0 %v1842
    %2307 = vmatprep.subr.bf16.mxu0 %v1847
    %2308 = vmatpush1.bf16.msra.mxu0 %v1846
    %2309 = vmatprep.subr.bf16.mxu0 %v1851
    %2310 = vmatpush1.bf16.msra.mxu0 %v1850
    %2311 = vmatprep.mubr.bf16.mxu0 %v675
    %2312 = vmatmul.mubr.bf16.gmra.mrb[0].mxu0 %v674
    %v2313 = vpop.f32.mrb[0].mxu0
    %v2314 = vadd.f32 %v2273, %v2313
    %v2315 = vpop.f32.mrb[0].mxu0
    %v2316 = vadd.f32 %v2275, %v2315
    %v2317 = vpop.f32.mrb[0].mxu0
    %v2318 = vpop.f32.mrb[0].mxu0
    %2319 = vdwg.mxu0
    %2320 = vmatprep.subr.bf16.mxu0 %v1855
    %2321 = vmatpush1.bf16.msra.mxu0 %v1854
    %2322 = vmatprep.subr.bf16.mxu0 %v1859
    %2323 = vmatpush1.bf16.msra.mxu0 %v1858
    %2324 = vmatprep.subr.bf16.mxu0 %v1863
    %2325 = vmatpush1.bf16.msra.mxu0 %v1862
    %2326 = vmatprep.subr.bf16.mxu0 %v1867
    %2327 = vmatpush1.bf16.msra.mxu0 %v1866
    %2328 = vmatprep.subr.bf16.mxu0 %v1871
    %2329 = vmatpush1.bf16.msra.mxu0 %v1870
    %2330 = vmatprep.subr.bf16.mxu0 %v1875
    %2331 = vmatpush1.bf16.msra.mxu0 %v1874
    %2332 = vmatprep.subr.bf16.mxu0 %v1879
    %2333 = vmatpush1.bf16.msra.mxu0 %v1878
    %2334 = vmatprep.subr.bf16.mxu0 %v1883
    %2335 = vmatpush1.bf16.msra.mxu0 %v1882
    %2336 = vmatprep.subr.bf16.mxu0 %v1887
    %2337 = vmatpush1.bf16.msra.mxu0 %v1886
    %2338 = vmatprep.subr.bf16.mxu0 %v1891
    %2339 = vmatpush1.bf16.msra.mxu0 %v1890
    %2340 = vmatprep.subr.bf16.mxu0 %v1895
    %2341 = vmatpush1.bf16.msra.mxu0 %v1894
    %2342 = vmatprep.subr.bf16.mxu0 %v1899
    %2343 = vmatpush1.bf16.msra.mxu0 %v1898
    %2344 = vmatprep.subr.bf16.mxu0 %v1903
    %2345 = vmatpush1.bf16.msra.mxu0 %v1902
    %2346 = vmatprep.subr.bf16.mxu0 %v1907
    %2347 = vmatpush1.bf16.msra.mxu0 %v1906
    %2348 = vmatprep.subr.bf16.mxu0 %v1911
    %2349 = vmatpush1.bf16.msra.mxu0 %v1910
    %2350 = vmatprep.subr.bf16.mxu0 %v1915
    %2351 = vmatpush1.bf16.msra.mxu0 %v1914
    %2352 = vmatprep.mubr.bf16.mxu0 %v677
    %2353 = vmatmul.mubr.bf16.gmra.mrb[0].mxu0 %v676
    %v2354 = vpop.f32.mrb[0].mxu0
    %v2355 = vadd.f32 %v2314, %v2354
    %v2356 = vpop.f32.mrb[0].mxu0
    %v2357 = vadd.f32 %v2316, %v2356
    %v2358 = vpop.f32.mrb[0].mxu0
    %v2359 = vpop.f32.mrb[0].mxu0
    %2360 = vdwg.mxu0
    %2361 = vmatprep.subr.bf16.mxu0 %v1919
    %2362 = vmatpush1.bf16.msra.mxu0 %v1918
    %2363 = vmatprep.subr.bf16.mxu0 %v1923
    %2364 = vmatpush1.bf16.msra.mxu0 %v1922
    %2365 = vmatprep.subr.bf16.mxu0 %v1927
    %2366 = vmatpush1.bf16.msra.mxu0 %v1926
    %2367 = vmatprep.subr.bf16.mxu0 %v1931
    %2368 = vmatpush1.bf16.msra.mxu0 %v1930
    %2369 = vmatprep.subr.bf16.mxu0 %v1935
    %2370 = vmatpush1.bf16.msra.mxu0 %v1934
    %2371 = vmatprep.subr.bf16.mxu0 %v1939
    %2372 = vmatpush1.bf16.msra.mxu0 %v1938
    %2373 = vmatprep.subr.bf16.mxu0 %v1943
    %2374 = vmatpush1.bf16.msra.mxu0 %v1942
    %2375 = vmatprep.subr.bf16.mxu0 %v1947
    %2376 = vmatpush1.bf16.msra.mxu0 %v1946
    %2377 = vmatprep.subr.bf16.mxu0 %v1951
    %2378 = vmatpush1.bf16.msra.mxu0 %v1950
    %2379 = vmatprep.subr.bf16.mxu0 %v1955
    %2380 = vmatpush1.bf16.msra.mxu0 %v1954
    %2381 = vmatprep.subr.bf16.mxu0 %v1959
    %2382 = vmatpush1.bf16.msra.mxu0 %v1958
    %2383 = vmatprep.subr.bf16.mxu0 %v1963
    %2384 = vmatpush1.bf16.msra.mxu0 %v1962
    %2385 = vmatprep.subr.bf16.mxu0 %v1967
    %2386 = vmatpush1.bf16.msra.mxu0 %v1966
    %2387 = vmatprep.subr.bf16.mxu0 %v1971
    %2388 = vmatpush1.bf16.msra.mxu0 %v1970
    %2389 = vmatprep.subr.bf16.mxu0 %v1975
    %2390 = vmatpush1.bf16.msra.mxu0 %v1974
    %2391 = vmatprep.subr.bf16.mxu0 %v1979
    %2392 = vmatpush1.bf16.msra.mxu0 %v1978
    %2393 = vmatprep.mubr.bf16.mxu0 %v679
    %2394 = vmatmul.mubr.bf16.gmra.mrb[0].mxu0 %v678
    %v2395 = vpop.f32.mrb[0].mxu0
    %v2396 = vadd.f32 %v2355, %v2395
    %v2397 = vpop.f32.mrb[0].mxu0
    %v2398 = vadd.f32 %v2357, %v2397
    %v2399 = vpop.f32.mrb[0].mxu0
    %v2400 = vpop.f32.mrb[0].mxu0
    %2401 = vdwg.mxu0
    %2402 = vmatprep.subr.bf16.mxu0 %v1729
    %2403 = vmatpush1.bf16.msra.mxu0 %v1728
    %2404 = vmatprep.subr.bf16.mxu0 %v1733
    %2405 = vmatpush1.bf16.msra.mxu0 %v1732
    %2406 = vmatprep.subr.bf16.mxu0 %v1737
    %2407 = vmatpush1.bf16.msra.mxu0 %v1736
    %2408 = vmatprep.subr.bf16.mxu0 %v1741
    %2409 = vmatpush1.bf16.msra.mxu0 %v1740
    %2410 = vmatprep.subr.bf16.mxu0 %v1745
    %2411 = vmatpush1.bf16.msra.mxu0 %v1744
    %2412 = vmatprep.subr.bf16.mxu0 %v1749
    %2413 = vmatpush1.bf16.msra.mxu0 %v1748
    %2414 = vmatprep.subr.bf16.mxu0 %v1753
    %2415 = vmatpush1.bf16.msra.mxu0 %v1752
    %2416 = vmatprep.subr.bf16.mxu0 %v1757
    %2417 = vmatpush1.bf16.msra.mxu0 %v1756
    %2418 = vmatprep.subr.bf16.mxu0 %v1761
    %2419 = vmatpush1.bf16.msra.mxu0 %v1760
    %2420 = vmatprep.subr.bf16.mxu0 %v1765
    %2421 = vmatpush1.bf16.msra.mxu0 %v1764
    %2422 = vmatprep.subr.bf16.mxu0 %v1769
    %2423 = vmatpush1.bf16.msra.mxu0 %v1768
    %2424 = vmatprep.subr.bf16.mxu0 %v1773
    %2425 = vmatpush1.bf16.msra.mxu0 %v1772
    %2426 = vmatprep.subr.bf16.mxu0 %v1777
    %2427 = vmatpush1.bf16.msra.mxu0 %v1776
    %2428 = vmatprep.subr.bf16.mxu0 %v1781
    %2429 = vmatpush1.bf16.msra.mxu0 %v1780
    %2430 = vmatprep.subr.bf16.mxu0 %v1785
    %2431 = vmatpush1.bf16.msra.mxu0 %v1784
    %2432 = vmatprep.subr.bf16.mxu0 %v1789
    %2433 = vmatpush1.bf16.msra.mxu0 %v1788
    %2434 = vmatprep.mubr.bf16.mxu0 %v673
    %2435 = vmatmul.mubr.bf16.gmra.mrb[0].mxu0 %v672
    %v2436 = vpop.f32.mrb[0].mxu0
    %v2437 = vadd.f32 %v949, %v2436
    %v2438 = vpop.f32.mrb[0].mxu0
    %v2439 = vadd.f32 %v953, %v2438
    %v2440 = vpop.f32.mrb[0].mxu0
    %v2441 = vpop.f32.mrb[0].mxu0
    %2442 = vdwg.mxu0
    %2443 = vmatprep.subr.bf16.mxu0 %v1793
    %2444 = vmatpush1.bf16.msra.mxu0 %v1792
    %2445 = vmatprep.subr.bf16.mxu0 %v1797
    %2446 = vmatpush1.bf16.msra.mxu0 %v1796
    %2447 = vmatprep.subr.bf16.mxu0 %v1801
    %2448 = vmatpush1.bf16.msra.mxu0 %v1800
    %2449 = vmatprep.subr.bf16.mxu0 %v1805
    %2450 = vmatpush1.bf16.msra.mxu0 %v1804
    %2451 = vmatprep.subr.bf16.mxu0 %v1809
    %2452 = vmatpush1.bf16.msra.mxu0 %v1808
    %2453 = vmatprep.subr.bf16.mxu0 %v1813
    %2454 = vmatpush1.bf16.msra.mxu0 %v1812
    %2455 = vmatprep.subr.bf16.mxu0 %v1817
    %2456 = vmatpush1.bf16.msra.mxu0 %v1816
    %2457 = vmatprep.subr.bf16.mxu0 %v1821
    %2458 = vmatpush1.bf16.msra.mxu0 %v1820
    %2459 = vmatprep.subr.bf16.mxu0 %v1825
    %2460 = vmatpush1.bf16.msra.mxu0 %v1824
    %2461 = vmatprep.subr.bf16.mxu0 %v1829
    %2462 = vmatpush1.bf16.msra.mxu0 %v1828
    %2463 = vmatprep.subr.bf16.mxu0 %v1833
    %2464 = vmatpush1.bf16.msra.mxu0 %v1832
    %2465 = vmatprep.subr.bf16.mxu0 %v1837
    %2466 = vmatpush1.bf16.msra.mxu0 %v1836
    %2467 = vmatprep.subr.bf16.mxu0 %v1841
    %2468 = vmatpush1.bf16.msra.mxu0 %v1840
    %2469 = vmatprep.subr.bf16.mxu0 %v1845
    %2470 = vmatpush1.bf16.msra.mxu0 %v1844
    %2471 = vmatprep.subr.bf16.mxu0 %v1849
    %2472 = vmatpush1.bf16.msra.mxu0 %v1848
    %2473 = vmatprep.subr.bf16.mxu0 %v1853
    %2474 = vmatpush1.bf16.msra.mxu0 %v1852
    %2475 = vmatprep.mubr.bf16.mxu0 %v675
    %2476 = vmatmul.mubr.bf16.gmra.mrb[0].mxu0 %v674
    %v2477 = vpop.f32.mrb[0].mxu0
    %v2478 = vadd.f32 %v2437, %v2477
    %v2479 = vpop.f32.mrb[0].mxu0
    %v2480 = vadd.f32 %v2439, %v2479
    %v2481 = vpop.f32.mrb[0].mxu0
    %v2482 = vpop.f32.mrb[0].mxu0
    %2483 = vdwg.mxu0
    %2484 = vmatprep.subr.bf16.mxu0 %v1857
    %2485 = vmatpush1.bf16.msra.mxu0 %v1856
    %2486 = vmatprep.subr.bf16.mxu0 %v1861
    %2487 = vmatpush1.bf16.msra.mxu0 %v1860
    %2488 = vmatprep.subr.bf16.mxu0 %v1865
    %2489 = vmatpush1.bf16.msra.mxu0 %v1864
    %2490 = vmatprep.subr.bf16.mxu0 %v1869
    %2491 = vmatpush1.bf16.msra.mxu0 %v1868
    %2492 = vmatprep.subr.bf16.mxu0 %v1873
    %2493 = vmatpush1.bf16.msra.mxu0 %v1872
    %2494 = vmatprep.subr.bf16.mxu0 %v1877
    %2495 = vmatpush1.bf16.msra.mxu0 %v1876
    %2496 = vmatprep.subr.bf16.mxu0 %v1881
    %2497 = vmatpush1.bf16.msra.mxu0 %v1880
    %2498 = vmatprep.subr.bf16.mxu0 %v1885
    %2499 = vmatpush1.bf16.msra.mxu0 %v1884
    %2500 = vmatprep.subr.bf16.mxu0 %v1889
    %2501 = vmatpush1.bf16.msra.mxu0 %v1888
    %2502 = vmatprep.subr.bf16.mxu0 %v1893
    %2503 = vmatpush1.bf16.msra.mxu0 %v1892
    %2504 = vmatprep.subr.bf16.mxu0 %v1897
    %2505 = vmatpush1.bf16.msra.mxu0 %v1896
    %2506 = vmatprep.subr.bf16.mxu0 %v1901
    %2507 = vmatpush1.bf16.msra.mxu0 %v1900
    %2508 = vmatprep.subr.bf16.mxu0 %v1905
    %2509 = vmatpush1.bf16.msra.mxu0 %v1904
    %2510 = vmatprep.subr.bf16.mxu0 %v1909
    %2511 = vmatpush1.bf16.msra.mxu0 %v1908
    %2512 = vmatprep.subr.bf16.mxu0 %v1913
    %2513 = vmatpush1.bf16.msra.mxu0 %v1912
    %2514 = vmatprep.subr.bf16.mxu0 %v1917
    %2515 = vmatpush1.bf16.msra.mxu0 %v1916
    %2516 = vmatprep.mubr.bf16.mxu0 %v677
    %2517 = vmatmul.mubr.bf16.gmra.mrb[0].mxu0 %v676
    %v2518 = vpop.f32.mrb[0].mxu0
    %v2519 = vadd.f32 %v2478, %v2518
    %v2520 = vpop.f32.mrb[0].mxu0
    %v2521 = vadd.f32 %v2480, %v2520
    %v2522 = vpop.f32.mrb[0].mxu0
    %v2523 = vpop.f32.mrb[0].mxu0
    %2524 = vdwg.mxu0
    %2525 = vmatprep.subr.bf16.mxu0 %v1921
    %2526 = vmatpush1.bf16.msra.mxu0 %v1920
    %2527 = vmatprep.subr.bf16.mxu0 %v1925
    %2528 = vmatpush1.bf16.msra.mxu0 %v1924
    %2529 = vmatprep.subr.bf16.mxu0 %v1929
    %2530 = vmatpush1.bf16.msra.mxu0 %v1928
    %2531 = vmatprep.subr.bf16.mxu0 %v1933
    %2532 = vmatpush1.bf16.msra.mxu0 %v1932
    %2533 = vmatprep.subr.bf16.mxu0 %v1937
    %2534 = vmatpush1.bf16.msra.mxu0 %v1936
    %2535 = vmatprep.subr.bf16.mxu0 %v1941
    %2536 = vmatpush1.bf16.msra.mxu0 %v1940
    %2537 = vmatprep.subr.bf16.mxu0 %v1945
    %2538 = vmatpush1.bf16.msra.mxu0 %v1944
    %2539 = vmatprep.subr.bf16.mxu0 %v1949
    %2540 = vmatpush1.bf16.msra.mxu0 %v1948
    %2541 = vmatprep.subr.bf16.mxu0 %v1953
    %2542 = vmatpush1.bf16.msra.mxu0 %v1952
    %2543 = vmatprep.subr.bf16.mxu0 %v1957
    %2544 = vmatpush1.bf16.msra.mxu0 %v1956
    %2545 = vmatprep.subr.bf16.mxu0 %v1961
    %2546 = vmatpush1.bf16.msra.mxu0 %v1960
    %2547 = vmatprep.subr.bf16.mxu0 %v1965
    %2548 = vmatpush1.bf16.msra.mxu0 %v1964
    %2549 = vmatprep.subr.bf16.mxu0 %v1969
    %2550 = vmatpush1.bf16.msra.mxu0 %v1968
    %2551 = vmatprep.subr.bf16.mxu0 %v1973
    %2552 = vmatpush1.bf16.msra.mxu0 %v1972
    %2553 = vmatprep.subr.bf16.mxu0 %v1977
    %2554 = vmatpush1.bf16.msra.mxu0 %v1976
    %2555 = vmatprep.subr.bf16.mxu0 %v1981
    %2556 = vmatpush1.bf16.msra.mxu0 %v1980
    %2557 = vmatprep.mubr.bf16.mxu0 %v679
    %2558 = vmatmul.mubr.bf16.gmra.mrb[0].mxu0 %v678
    %v2559 = vpop.f32.mrb[0].mxu0
    %v2560 = vadd.f32 %v2519, %v2559
    %v2561 = vpop.f32.mrb[0].mxu0
    %v2562 = vadd.f32 %v2521, %v2561
    %v2563 = vpop.f32.mrb[0].mxu0
    %v2564 = vpop.f32.mrb[0].mxu0
    %2565 = vdwg.mxu0
    %v2566 = vmax.f32 %v2396, 0.0
    %v2567 = vmax.f32 %v2398, 0.0
    %v2568 = vmax.f32 %v2560, 0.0
    %v2569 = vmax.f32 %v2562, 0.0
    %v2570 = vpack.c.bf16 %v2566, %v2566
    %v2571 = vpack.c.bf16 %v2567, %v2567
    %v2572 = vpack.c.bf16 %v2568, %v2568
    %v2573 = vpack.c.bf16 %v2569, %v2569
    %v2574 = vld [vmem:[#allocation6] sm:$0xf]
    %v2575 = vld [vmem:[#allocation6 + $0x4] sm:$0xf]
    %v2576 = vld [vmem:[#allocation6 + $0x8] sm:$0xf]
    %v2577 = vld [vmem:[#allocation6 + $0xc] sm:$0xf]
    %v2578 = vld [vmem:[#allocation6 + $0x10] sm:$0xf]
    %v2579 = vld [vmem:[#allocation6 + $0x14] sm:$0xf]
    %v2580 = vld [vmem:[#allocation6 + $0x18] sm:$0xf]
    %v2581 = vld [vmem:[#allocation6 + $0x1c] sm:$0xf]
    %v2582 = vld [vmem:[#allocation6 + $0x20] sm:$0xf]
    %v2583 = vld [vmem:[#allocation6 + $0x24] sm:$0xf]
    %v2584 = vld [vmem:[#allocation6 + $0x28] sm:$0xf]
    %v2585 = vld [vmem:[#allocation6 + $0x2c] sm:$0xf]
    %v2586 = vld [vmem:[#allocation6 + $0x30] sm:$0xf]
    %v2587 = vld [vmem:[#allocation6 + $0x34] sm:$0xf]
    %v2588 = vld [vmem:[#allocation6 + $0x38] sm:$0xf]
    %v2589 = vld [vmem:[#allocation6 + $0x3c] sm:$0xf]
    %v2590 = vld [vmem:[#allocation6 + $0x40] sm:$0xf]
    %v2591 = vld [vmem:[#allocation6 + $0x44] sm:$0xf]
    %v2592 = vld [vmem:[#allocation6 + $0x48] sm:$0xf]
    %v2593 = vld [vmem:[#allocation6 + $0x4c] sm:$0xf]
    %v2594 = vld [vmem:[#allocation6 + $0x50] sm:$0xf]
    %v2595 = vld [vmem:[#allocation6 + $0x54] sm:$0xf]
    %v2596 = vld [vmem:[#allocation6 + $0x58] sm:$0xf]
    %v2597 = vld [vmem:[#allocation6 + $0x5c] sm:$0xf]
    %v2598 = vld [vmem:[#allocation6 + $0x60] sm:$0xf]
    %v2599 = vld [vmem:[#allocation6 + $0x64] sm:$0xf]
    %v2600 = vld [vmem:[#allocation6 + $0x68] sm:$0xf]
    %v2601 = vld [vmem:[#allocation6 + $0x6c] sm:$0xf]
    %v2602 = vld [vmem:[#allocation6 + $0x70] sm:$0xf]
    %v2603 = vld [vmem:[#allocation6 + $0x74] sm:$0xf]
    %v2604 = vld [vmem:[#allocation6 + $0x78] sm:$0xf]
    %v2605 = vld [vmem:[#allocation6 + $0x7c] sm:$0xf]
    %v2606 = vld [vmem:[#allocation6 + $0x80] sm:$0xf]
    %v2607 = vld [vmem:[#allocation6 + $0x84] sm:$0xf]
    %v2608 = vld [vmem:[#allocation6 + $0x88] sm:$0xf]
    %v2609 = vld [vmem:[#allocation6 + $0x8c] sm:$0xf]
    %v2610 = vld [vmem:[#allocation6 + $0x90] sm:$0xf]
    %v2611 = vld [vmem:[#allocation6 + $0x94] sm:$0xf]
    %v2612 = vld [vmem:[#allocation6 + $0x98] sm:$0xf]
    %v2613 = vld [vmem:[#allocation6 + $0x9c] sm:$0xf]
    %v2614 = vld [vmem:[#allocation6 + $0xa0] sm:$0xf]
    %v2615 = vld [vmem:[#allocation6 + $0xa4] sm:$0xf]
    %v2616 = vld [vmem:[#allocation6 + $0xa8] sm:$0xf]
    %v2617 = vld [vmem:[#allocation6 + $0xac] sm:$0xf]
    %v2618 = vld [vmem:[#allocation6 + $0xb0] sm:$0xf]
    %v2619 = vld [vmem:[#allocation6 + $0xb4] sm:$0xf]
    %v2620 = vld [vmem:[#allocation6 + $0xb8] sm:$0xf]
    %v2621 = vld [vmem:[#allocation6 + $0xbc] sm:$0xf]
    %v2622 = vld [vmem:[#allocation6 + $0xc0] sm:$0xf]
    %v2623 = vld [vmem:[#allocation6 + $0xc4] sm:$0xf]
    %v2624 = vld [vmem:[#allocation6 + $0xc8] sm:$0xf]
    %v2625 = vld [vmem:[#allocation6 + $0xcc] sm:$0xf]
    %v2626 = vld [vmem:[#allocation6 + $0xd0] sm:$0xf]
    %v2627 = vld [vmem:[#allocation6 + $0xd4] sm:$0xf]
    %v2628 = vld [vmem:[#allocation6 + $0xd8] sm:$0xf]
    %v2629 = vld [vmem:[#allocation6 + $0xdc] sm:$0xf]
    %v2630 = vld [vmem:[#allocation6 + $0xe0] sm:$0xf]
    %v2631 = vld [vmem:[#allocation6 + $0xe4] sm:$0xf]
    %v2632 = vld [vmem:[#allocation6 + $0xe8] sm:$0xf]
    %v2633 = vld [vmem:[#allocation6 + $0xec] sm:$0xf]
    %v2634 = vld [vmem:[#allocation6 + $0xf0] sm:$0xf]
    %v2635 = vld [vmem:[#allocation6 + $0xf4] sm:$0xf]
    %v2636 = vld [vmem:[#allocation6 + $0xf8] sm:$0xf]
    %v2637 = vld [vmem:[#allocation6 + $0xfc] sm:$0xf]
    %v2638 = vld [vmem:[%s6] sm:$0x1]
    %v2640 = vlaneseq
    %v2641 = vshrl.u32 %v2640, 7
    %v2642 = vsub.s32 0, %v2641
    %v2643 = vrot.slane %v2638, %v2642
    %v2709 = vunpack.c.l.b16 %v2574
    %v2710 = vunpack.c.l.b16 %v2575
    %v2711 = vunpack.c.l.b16 %v2576
    %v2712 = vunpack.c.l.b16 %v2577
    %v2713 = vunpack.c.l.b16 %v2578
    %v2714 = vunpack.c.l.b16 %v2579
    %v2715 = vunpack.c.l.b16 %v2580
    %v2716 = vunpack.c.l.b16 %v2581
    %v2717 = vunpack.c.l.b16 %v2582
    %v2718 = vunpack.c.l.b16 %v2583
    %v2719 = vunpack.c.l.b16 %v2584
    %v2720 = vunpack.c.l.b16 %v2585
    %v2721 = vunpack.c.l.b16 %v2586
    %v2722 = vunpack.c.l.b16 %v2587
    %v2723 = vunpack.c.l.b16 %v2588
    %v2724 = vunpack.c.l.b16 %v2589
    %v2725 = vunpack.c.l.b16 %v2590
    %v2726 = vunpack.c.l.b16 %v2591
    %v2727 = vunpack.c.l.b16 %v2592
    %v2728 = vunpack.c.l.b16 %v2593
    %v2729 = vunpack.c.l.b16 %v2594
    %v2730 = vunpack.c.l.b16 %v2595
    %v2731 = vunpack.c.l.b16 %v2596
    %v2732 = vunpack.c.l.b16 %v2597
    %v2733 = vunpack.c.l.b16 %v2598
    %v2734 = vunpack.c.l.b16 %v2599
    %v2735 = vunpack.c.l.b16 %v2600
    %v2736 = vunpack.c.l.b16 %v2601
    %v2737 = vunpack.c.l.b16 %v2602
    %v2738 = vunpack.c.l.b16 %v2603
    %v2739 = vunpack.c.l.b16 %v2604
    %v2740 = vunpack.c.l.b16 %v2605
    %v2741 = vunpack.c.l.b16 %v2606
    %v2742 = vunpack.c.l.b16 %v2607
    %v2743 = vunpack.c.l.b16 %v2608
    %v2744 = vunpack.c.l.b16 %v2609
    %v2745 = vunpack.c.l.b16 %v2610
    %v2746 = vunpack.c.l.b16 %v2611
    %v2747 = vunpack.c.l.b16 %v2612
    %v2748 = vunpack.c.l.b16 %v2613
    %v2749 = vunpack.c.l.b16 %v2614
    %v2750 = vunpack.c.l.b16 %v2615
    %v2751 = vunpack.c.l.b16 %v2616
    %v2752 = vunpack.c.l.b16 %v2617
    %v2753 = vunpack.c.l.b16 %v2618
    %v2754 = vunpack.c.l.b16 %v2619
    %v2755 = vunpack.c.l.b16 %v2620
    %v2756 = vunpack.c.l.b16 %v2621
    %v2757 = vunpack.c.l.b16 %v2622
    %v2758 = vunpack.c.l.b16 %v2623
    %v2759 = vunpack.c.l.b16 %v2624
    %v2760 = vunpack.c.l.b16 %v2625
    %v2761 = vunpack.c.l.b16 %v2626
    %v2762 = vunpack.c.l.b16 %v2627
    %v2763 = vunpack.c.l.b16 %v2628
    %v2764 = vunpack.c.l.b16 %v2629
    %v2765 = vunpack.c.l.b16 %v2630
    %v2766 = vunpack.c.l.b16 %v2631
    %v2767 = vunpack.c.l.b16 %v2632
    %v2768 = vunpack.c.l.b16 %v2633
    %v2769 = vunpack.c.l.b16 %v2634
    %v2770 = vunpack.c.l.b16 %v2635
    %v2771 = vunpack.c.l.b16 %v2636
    %v2772 = vunpack.c.l.b16 %v2637
    %v2773 = vpack.c.b16 %v2710, %v2709
    %v2774 = vpack.c.b16 %v2712, %v2711
    %v2775 = vpack.c.b16 %v2714, %v2713
    %v2776 = vpack.c.b16 %v2716, %v2715
    %v2777 = vpack.c.b16 %v2718, %v2717
    %v2778 = vpack.c.b16 %v2720, %v2719
    %v2779 = vpack.c.b16 %v2722, %v2721
    %v2780 = vpack.c.b16 %v2724, %v2723
    %v2781 = vpack.c.b16 %v2726, %v2725
    %v2782 = vpack.c.b16 %v2728, %v2727
    %v2783 = vpack.c.b16 %v2730, %v2729
    %v2784 = vpack.c.b16 %v2732, %v2731
    %v2785 = vpack.c.b16 %v2734, %v2733
    %v2786 = vpack.c.b16 %v2736, %v2735
    %v2787 = vpack.c.b16 %v2738, %v2737
    %v2788 = vpack.c.b16 %v2740, %v2739
    %v2789 = vpack.c.b16 %v2742, %v2741
    %v2790 = vpack.c.b16 %v2744, %v2743
    %v2791 = vpack.c.b16 %v2746, %v2745
    %v2792 = vpack.c.b16 %v2748, %v2747
    %v2793 = vpack.c.b16 %v2750, %v2749
    %v2794 = vpack.c.b16 %v2752, %v2751
    %v2795 = vpack.c.b16 %v2754, %v2753
    %v2796 = vpack.c.b16 %v2756, %v2755
    %v2797 = vpack.c.b16 %v2758, %v2757
    %v2798 = vpack.c.b16 %v2760, %v2759
    %v2799 = vpack.c.b16 %v2762, %v2761
    %v2800 = vpack.c.b16 %v2764, %v2763
    %v2801 = vpack.c.b16 %v2766, %v2765
    %v2802 = vpack.c.b16 %v2768, %v2767
    %v2803 = vpack.c.b16 %v2770, %v2769
    %v2804 = vpack.c.b16 %v2772, %v2771
    %2837 = vmatprep.subr.bf16.mxu0 0
    %2838 = vmatpush1.bf16.msra.mxu0 %v2773
    %2839 = vmatprep.subr.bf16.mxu0 0
    %2840 = vmatpush1.bf16.msra.mxu0 %v2774
    %2841 = vmatprep.subr.bf16.mxu0 0
    %2842 = vmatpush1.bf16.msra.mxu0 %v2775
    %2843 = vmatprep.subr.bf16.mxu0 0
    %2844 = vmatpush1.bf16.msra.mxu0 %v2776
    %2845 = vmatprep.subr.bf16.mxu0 0
    %2846 = vmatpush1.bf16.msra.mxu0 %v2777
    %2847 = vmatprep.subr.bf16.mxu0 0
    %2848 = vmatpush1.bf16.msra.mxu0 %v2778
    %2849 = vmatprep.subr.bf16.mxu0 0
    %2850 = vmatpush1.bf16.msra.mxu0 %v2779
    %2851 = vmatprep.subr.bf16.mxu0 0
    %2852 = vmatpush1.bf16.msra.mxu0 %v2780
    %2853 = vmatprep.subr.bf16.mxu0 0
    %2854 = vmatpush1.bf16.msra.mxu0 %v2781
    %2855 = vmatprep.subr.bf16.mxu0 0
    %2856 = vmatpush1.bf16.msra.mxu0 %v2782
    %2857 = vmatprep.subr.bf16.mxu0 0
    %2858 = vmatpush1.bf16.msra.mxu0 %v2783
    %2859 = vmatprep.subr.bf16.mxu0 0
    %2860 = vmatpush1.bf16.msra.mxu0 %v2784
    %2861 = vmatprep.subr.bf16.mxu0 0
    %2862 = vmatpush1.bf16.msra.mxu0 %v2785
    %2863 = vmatprep.subr.bf16.mxu0 0
    %2864 = vmatpush1.bf16.msra.mxu0 %v2786
    %2865 = vmatprep.subr.bf16.mxu0 0
    %2866 = vmatpush1.bf16.msra.mxu0 %v2787
    %2867 = vmatprep.subr.bf16.mxu0 0
    %2868 = vmatpush1.bf16.msra.mxu0 %v2788
    %2869 = vmatprep.mubr.bf16.mxu0 %v2571
    %2870 = vmatmul.mubr.bf16.gmra.mrb[0].mxu0 %v2570
    %v2871 = vpop.f32.mrb[0].mxu0
    %v2872 = vadd.f32 %v2643, %v2871
    %v2873 = vpop.f32.mrb[0].mxu0
    %v2874 = vpop.f32.mrb[0].mxu0
    %v2875 = vpop.f32.mrb[0].mxu0
    %2876 = vdwg.mxu0
    %2877 = vmatprep.subr.bf16.mxu0 0
    %2878 = vmatpush1.bf16.msra.mxu0 %v2789
    %2879 = vmatprep.subr.bf16.mxu0 0
    %2880 = vmatpush1.bf16.msra.mxu0 %v2790
    %2881 = vmatprep.subr.bf16.mxu0 0
    %2882 = vmatpush1.bf16.msra.mxu0 %v2791
    %2883 = vmatprep.subr.bf16.mxu0 0
    %2884 = vmatpush1.bf16.msra.mxu0 %v2792
    %2885 = vmatprep.subr.bf16.mxu0 0
    %2886 = vmatpush1.bf16.msra.mxu0 %v2793
    %2887 = vmatprep.subr.bf16.mxu0 0
    %2888 = vmatpush1.bf16.msra.mxu0 %v2794
    %2889 = vmatprep.subr.bf16.mxu0 0
    %2890 = vmatpush1.bf16.msra.mxu0 %v2795
    %2891 = vmatprep.subr.bf16.mxu0 0
    %2892 = vmatpush1.bf16.msra.mxu0 %v2796
    %2893 = vmatprep.subr.bf16.mxu0 0
    %2894 = vmatpush1.bf16.msra.mxu0 %v2797
    %2895 = vmatprep.subr.bf16.mxu0 0
    %2896 = vmatpush1.bf16.msra.mxu0 %v2798
    %2897 = vmatprep.subr.bf16.mxu0 0
    %2898 = vmatpush1.bf16.msra.mxu0 %v2799
    %2899 = vmatprep.subr.bf16.mxu0 0
    %2900 = vmatpush1.bf16.msra.mxu0 %v2800
    %2901 = vmatprep.subr.bf16.mxu0 0
    %2902 = vmatpush1.bf16.msra.mxu0 %v2801
    %2903 = vmatprep.subr.bf16.mxu0 0
    %2904 = vmatpush1.bf16.msra.mxu0 %v2802
    %2905 = vmatprep.subr.bf16.mxu0 0
    %2906 = vmatpush1.bf16.msra.mxu0 %v2803
    %2907 = vmatprep.subr.bf16.mxu0 0
    %2908 = vmatpush1.bf16.msra.mxu0 %v2804
    %2909 = vmatprep.mubr.bf16.mxu0 %v2573
    %2910 = vmatmul.mubr.bf16.gmra.mrb[0].mxu0 %v2572
    %v2911 = vpop.f32.mrb[0].mxu0
    %v2912 = vadd.f32 %v2872, %v2911
    %v2913 = vpop.f32.mrb[0].mxu0
    %v2914 = vpop.f32.mrb[0].mxu0
    %v2915 = vpop.f32.mrb[0].mxu0
    %2916 = vdwg.mxu0
    %v2917 = vmax.f32 %v2912, 0.0
    %v2918 = vrot.slane %v2917, 4
    %v2919 = vadd.f32 %v2917, %v2918
    %v2920 = vrot.slane %v2919, 2
    %v2921 = vadd.f32 %v2919, %v2920
    %v2922 = vrot.slane %v2921, 1
    %v2923 = vadd.f32 %v2921, %v2922
    %v2924 = vrcp.pop 8.0
    %v2925 = vmul.f32 %v2923, %v2924
    %v2926 = vsub.f32 %v2917, %v2925
    %v2927 = vmul.f32 %v2926, %v2926
    %v2928 = vrot.slane %v2927, 4
    %v2929 = vadd.f32 %v2927, %v2928
    %v2930 = vrot.slane %v2929, 2
    %v2931 = vadd.f32 %v2929, %v2930
    %v2932 = vrot.slane %v2931, 1
    %v2933 = vadd.f32 %v2931, %v2932
    %v2934 = vmul.f32 %v2933, %v2924
    %v2935 = vadd.f32 %v2934, 1e-05
    %v2936 = vrsqrt.pop %v2935
    %v2937 = vmul.f32 %v2926, %v2936
    %v2938 = vld [vmem:[%s7] sm:$0x1]
    %v2940 = vlaneseq
    %v2941 = vshrl.u32 %v2940, 7
    %v2942 = vsub.s32 0, %v2941
    %v2943 = vrot.slane %v2938, %v2942
    %v2945 = vmul.f32 %v2937, %v2943
    %v2946 = vld [vmem:[%s8] sm:$0x1]
    %v2948 = vlaneseq
    %v2949 = vshrl.u32 %v2948, 7
    %v2950 = vsub.s32 0, %v2949
    %v2951 = vrot.slane %v2946, %v2950
    %v2953 = vadd.f32 %v2945, %v2951
    %v2954 = vpack.c.bf16 %v2953, %v2953
    %v2955 = vld [vmem:[%s9] sm:$0xf]
    %v2956 = vld [vmem:[%s9 + $0x4] sm:$0xf]
    %v2957 = vld [vmem:[%s9 + $0x8] sm:$0xf]
    %v2958 = vld [vmem:[%s9 + $0xc] sm:$0xf]
    %v2959 = vld [vmem:[%s9 + $0x10] sm:$0xf]
    %v2960 = vld [vmem:[%s9 + $0x14] sm:$0xf]
    %v2961 = vld [vmem:[%s9 + $0x18] sm:$0xf]
    %v2962 = vld [vmem:[%s9 + $0x1c] sm:$0xf]
    %v2963 = vld [vmem:[%s9 + $0x20] sm:$0xf]
    %v2964 = vld [vmem:[%s9 + $0x24] sm:$0xf]
    %v2965 = vld [vmem:[%s9 + $0x28] sm:$0xf]
    %v2966 = vld [vmem:[%s9 + $0x2c] sm:$0xf]
    %v2967 = vld [vmem:[%s9 + $0x30] sm:$0xf]
    %v2968 = vld [vmem:[%s9 + $0x34] sm:$0xf]
    %v2969 = vld [vmem:[%s9 + $0x38] sm:$0xf]
    %v2970 = vld [vmem:[%s9 + $0x3c] sm:$0xf]
    %v2971 = vld [vmem:[%s10] sm:$0x1]
    %v2973 = vlaneseq
    %v2974 = vshrl.u32 %v2973, 7
    %v2975 = vsub.s32 0, %v2974
    %v2976 = vrot.slane %v2971, %v2975
    %v2994 = vunpack.c.l.b16 %v2955
    %v2995 = vunpack.c.l.b16 %v2956
    %v2996 = vunpack.c.l.b16 %v2957
    %v2997 = vunpack.c.l.b16 %v2958
    %v2998 = vunpack.c.l.b16 %v2959
    %v2999 = vunpack.c.l.b16 %v2960
    %v3000 = vunpack.c.l.b16 %v2961
    %v3001 = vunpack.c.l.b16 %v2962
    %v3002 = vunpack.c.l.b16 %v2963
    %v3003 = vunpack.c.l.b16 %v2964
    %v3004 = vunpack.c.l.b16 %v2965
    %v3005 = vunpack.c.l.b16 %v2966
    %v3006 = vunpack.c.l.b16 %v2967
    %v3007 = vunpack.c.l.b16 %v2968
    %v3008 = vunpack.c.l.b16 %v2969
    %v3009 = vunpack.c.l.b16 %v2970
    %v3010 = vpack.c.b16 %v2995, %v2994
    %v3011 = vpack.c.b16 %v2997, %v2996
    %v3012 = vpack.c.b16 %v2999, %v2998
    %v3013 = vpack.c.b16 %v3001, %v3000
    %v3014 = vpack.c.b16 %v3003, %v3002
    %v3015 = vpack.c.b16 %v3005, %v3004
    %v3016 = vpack.c.b16 %v3007, %v3006
    %v3017 = vpack.c.b16 %v3009, %v3008
    %3026 = vmatprep.subr.bf16.mxu0 0
    %3027 = vmatpush1.bf16.msra.mxu0 %v3010
    %3028 = vmatprep.subr.bf16.mxu0 0
    %3029 = vmatpush1.bf16.msra.mxu0 %v3011
    %3030 = vmatprep.subr.bf16.mxu0 0
    %3031 = vmatpush1.bf16.msra.mxu0 %v3012
    %3032 = vmatprep.subr.bf16.mxu0 0
    %3033 = vmatpush1.bf16.msra.mxu0 %v3013
    %3034 = vmatprep.subr.bf16.mxu0 0
    %3035 = vmatpush1.bf16.msra.mxu0 %v3014
    %3036 = vmatprep.subr.bf16.mxu0 0
    %3037 = vmatpush1.bf16.msra.mxu0 %v3015
    %3038 = vmatprep.subr.bf16.mxu0 0
    %3039 = vmatpush1.bf16.msra.mxu0 %v3016
    %3040 = vmatprep.subr.bf16.mxu0 0
    %3041 = vmatpush1.bf16.msra.mxu0 %v3017
    %3042 = vmatprep.subr.bf16.mxu0 0
    %3043 = vmatpush1.bf16.msra.mxu0 0
    %3044 = vmatprep.subr.bf16.mxu0 0
    %3045 = vmatpush1.bf16.msra.mxu0 0
    %3046 = vmatprep.subr.bf16.mxu0 0
    %3047 = vmatpush1.bf16.msra.mxu0 0
    %3048 = vmatprep.subr.bf16.mxu0 0
    %3049 = vmatpush1.bf16.msra.mxu0 0
    %3050 = vmatprep.subr.bf16.mxu0 0
    %3051 = vmatpush1.bf16.msra.mxu0 0
    %3052 = vmatprep.subr.bf16.mxu0 0
    %3053 = vmatpush1.bf16.msra.mxu0 0
    %3054 = vmatprep.subr.bf16.mxu0 0
    %3055 = vmatpush1.bf16.msra.mxu0 0
    %3056 = vmatprep.subr.bf16.mxu0 0
    %3057 = vmatpush1.bf16.msra.mxu0 0
    %3058 = vmatprep.mubr.bf16.mxu0 0
    %3059 = vmatmul.mubr.bf16.gmra.mrb[0].mxu0 %v2954
    %v3060 = vpop.f32.mrb[0].mxu0
    %v3061 = vadd.f32 %v2976, %v3060
    %v3062 = vpop.f32.mrb[0].mxu0
    %v3063 = vpop.f32.mrb[0].mxu0
    %v3064 = vpop.f32.mrb[0].mxu0
    %3065 = vdwg.mxu0
    %3066 = vst [vmem:[%s11] sm:$0xff] %v3061
    // Predicated region
    $region58: #{my_network_noimage_forward.1} parent=1 // pred_check
      _
    $region59: #{my_network_noimage_forward.1} parent=1 // pred_check_branch
      %3068 = sbr.rel (0) target = $region61
    $region60: #{my_network_noimage_forward.1} parent=1 // pred_region
      _
    $region61: #{my_network_noimage_forward.1} parent=1 // pred_fallthru
      _
    // Predicated region
    $region62: #{my_network_noimage_forward.1} parent=1 // pred_check
      _
    $region63: #{my_network_noimage_forward.1} parent=1 // pred_check_branch
      %3070 = sbr.rel (0) target = $region65
    $region64: #{my_network_noimage_forward.1} parent=1 // pred_region
      _
    $region65: #{my_network_noimage_forward.1} parent=1 // pred_fallthru
      _
    %3071 = vsyncpa [#allocation3], 1
    %3072 = vsyncpa [#allocation5], 1

</llo_original>
